<compile_context>
chip_gen: v7x
topology: tpu7x:2x2x1
jax: 0.10.0
libtpu: 0.0.40
codegen_flags: <defaults>
</compile_context>

<pallas_src>
import jax
import jax.numpy as jnp
from jax import lax
from jax.experimental import pallas as pl
from jax.experimental.pallas import tpu as pltpu
import numpy as np

_LANES = 128              # TPU vreg lane width: pad class/feature axes to this
_NEG_INF = -1e30          # finite mask for padded classes (do NOT use -inf)


def _round_up(x, m):
    return (x + m - 1) // m * m


def _reptile_fused_kernel(lr_ref, x_ref, lab_ref, w0_ref, b0_ref,
                          w_ref, b_ref, loss_ref, acc_ref):
    """Whole inner SGD loop in one kernel invocation (no grid).

    lr_ref           : SMEM (1,) f32            learning rate
    x_ref            : VMEM (S, B, DP) f32      all sampled step batches (lane-padded D)
    lab_ref          : VMEM (S, B, 1)  i32      integer class labels per step
    w0_ref / b0_ref  : VMEM (DP, CP) / (1, CP)  initial parameters (padded)
    w_ref  / b_ref   : VMEM (DP, CP) / (1, CP)  updated parameters (outputs)
    loss_ref/acc_ref : SMEM (1, 1)              last-step loss / accuracy
    """
    S, B, _ = x_ref.shape
    CP = w0_ref.shape[1]
    lr = lr_ref[0]                                    # scalar f32 from SMEM
    inv_bsz = jnp.float32(1.0 / B)
    cls_idx = lax.broadcasted_iota(jnp.int32, (B, CP), 1)   # hoisted out of loop

    def inner_step(x, lab, w, b):
        # one-hot built in-kernel from int labels (padded classes -> 0)
        y = (cls_idx == lab).astype(jnp.float32)                      # [B, CP]
        # ---- forward: logits = x @ W + b (MXU) ----
        logits = jnp.dot(x, w, preferred_element_type=jnp.float32) + b
        # ---- softmax (padded logits = -1e30 -> exp underflows to exactly 0) ----
        m = jnp.max(logits, axis=-1, keepdims=True)                   # [B, 1]
        e = jnp.exp(logits - m)
        ssum = jnp.sum(e, axis=-1, keepdims=True)
        p = e * pl.reciprocal(ssum, approx=False)
        # ---- analytic backward + SGD update (padded cols/rows get exactly 0 grad) ----
        dlogits = (p - y) * inv_bsz                                   # [B, CP]
        dw = lax.dot_general(x, dlogits, (((0,), (0,)), ((), ())),
                             preferred_element_type=jnp.float32)      # [DP, CP]
        db = jnp.sum(dlogits, axis=0, keepdims=True)                  # [1, CP]
        return w - lr * dw, b - lr * db, logits, m, ssum, y

    def body(s, carry):
        w, b = carry
        w, b, *_ = inner_step(x_ref[s], lab_ref[s], w, b)
        return (w, b)

    # Steps 0 .. S-2: no stats needed.  Fully unrolled for small S so the LLO
    # scheduler sees across step boundaries.
    w, b = lax.fori_loop(0, S - 1, body, (w0_ref[...], b0_ref[...]),
                         unroll=(S <= 16))

    # Last step: also report loss / accuracy (the reference reports only this step).
    x = x_ref[S - 1]
    lab = lab_ref[S - 1]                                              # [B, 1] int32
    w_new, b_new, logits, m, ssum, y = inner_step(x, lab, w, b)
    w_ref[...] = w_new
    b_ref[...] = b_new

    log_p = (logits - m) - jnp.log(ssum)                              # log-softmax
    loss_ref[0, 0] = -jnp.sum(y * log_p) * inv_bsz                    # CE, mean

    is_max = logits >= m
    # first-occurrence argmax = min class index among maxima (matches jnp.argmax)
    pred = jnp.min(jnp.where(is_max, cls_idx, jnp.int32(CP)),
                   axis=-1, keepdims=True)                            # [B, 1] int32
    acc_ref[0, 0] = jnp.sum((pred == lab).astype(jnp.float32)) * inv_bsz


def reptile_inner_loop(xs, labels, w_init, b_init, lr):
    """Fused inner loop.

    xs:     [S, B, D] f32   pre-sampled per-step batches
    labels: [S, B]    int   per-step integer class labels
    Returns (w_new [D,C], b_new [1,C], last_loss, last_acc)."""
    S, B, D = xs.shape
    C = w_init.shape[1]
    DP = _round_up(D, _LANES)
    CP = _round_up(C, _LANES)

    # Lane-dense padding of feature and class axes (zero padding -> exact math).
    x_p = jnp.zeros((S, B, DP), jnp.float32).at[..., :D].set(xs.astype(jnp.float32))
    lab = labels.astype(jnp.int32).reshape(S, B, 1)
    w_p = jnp.zeros((DP, CP), jnp.float32).at[:D, :C].set(w_init.astype(jnp.float32))
    b_p = jnp.full((1, CP), _NEG_INF, jnp.float32).at[:, :C].set(
        b_init.astype(jnp.float32))
    lr_arr = jnp.full((1,), lr, jnp.float32)

    w_out, b_out, loss, acc = pl.pallas_call(
        _reptile_fused_kernel,
        in_specs=[
            pl.BlockSpec(memory_space=pltpu.MemorySpace.SMEM),   # lr
            pl.BlockSpec(memory_space=pltpu.MemorySpace.VMEM),   # xs (all steps)
            pl.BlockSpec(memory_space=pltpu.MemorySpace.VMEM),   # int labels
            pl.BlockSpec(memory_space=pltpu.MemorySpace.VMEM),   # W init
            pl.BlockSpec(memory_space=pltpu.MemorySpace.VMEM),   # b init
        ],
        out_specs=(
            pl.BlockSpec(memory_space=pltpu.MemorySpace.VMEM),   # W updated
            pl.BlockSpec(memory_space=pltpu.MemorySpace.VMEM),   # b updated
            pl.BlockSpec(memory_space=pltpu.MemorySpace.SMEM),   # loss scalar
            pl.BlockSpec(memory_space=pltpu.MemorySpace.SMEM),   # acc scalar
        ),
        out_shape=(
            jax.ShapeDtypeStruct((DP, CP), jnp.float32),
            jax.ShapeDtypeStruct((1, CP), jnp.float32),
            jax.ShapeDtypeStruct((1, 1), jnp.float32),
            jax.ShapeDtypeStruct((1, 1), jnp.float32),
        ),
        # Donate the padded-param input buffers to the param outputs
        # (no second HBM allocation for the resident parameters).
        input_output_aliases={3: 0, 4: 1},
    )(lr_arr, x_p, lab, w_p, b_p)

    return w_out[:D, :C], b_out[:, :C], loss[0, 0], acc[0, 0]


def reptile_forward(key, train_x, train_labels, w_init, b_init, *,
                    update_step, inner_batch_size, lr):
    """Equivalent of Reptile.forward: inner SGD loop -> (loss, acc, updated_params).

    Initial params (w_init, b_init) are left untouched — mirrors the
    load_state_dict(init_params) restore at the end of forward()."""
    n = train_x.shape[0]
    # sample_batch for every step at once (plain-JAX glue outside the kernel).
    # TODO(synk): for large update_step, gather in-kernel from a resident
    # training set via scalar-prefetched indices instead of duplicating S x.
    idx = jax.random.randint(key, (update_step, inner_batch_size), 0, n)
    xs = jnp.take(train_x, idx, axis=0)                # [S, B, D]
    labs = jnp.take(train_labels, idx, axis=0)         # [S, B]
    w, b, loss, acc = reptile_inner_loop(xs, labs, w_init, b_init, lr)
    updated_params = {"weight": w, "bias": b}
    return loss, acc, updated_params


def _reference_loop(xs, labels, w, b, lr, num_classes):
    """Pure-JAX reference of the whole inner loop (for the correctness check)."""
    loss = acc = jnp.float32(0.0)
    for s in range(xs.shape[0]):
        x, lab = xs[s], labels[s]
        y = jax.nn.one_hot(lab, num_classes, dtype=jnp.float32)
        bsz = x.shape[0]
        logits = x @ w + b
        logp = jax.nn.log_softmax(logits, axis=-1)
        loss = -jnp.sum(y * logp) / bsz
        acc = jnp.mean((jnp.argmax(logits, -1) == lab).astype(jnp.float32))
        dlogits = (jax.nn.softmax(logits, -1) - y) / bsz
        w = w - lr * (x.T @ dlogits)
        b = b - lr * jnp.sum(dlogits, 0, keepdims=True)
    return w, b, loss, acc


if __name__ == "__main__":
    # Small, deterministic problem: 16 train samples, 32 features, 8 classes.
    N, D, C = 16, 32, 8
    INNER_BATCH = 8
    UPDATE_STEP = 3
    LR = 0.1

    key = jax.random.PRNGKey(0)
    k_x, k_y, k_w, k_loop = jax.random.split(key, 4)

    train_x = jax.random.normal(k_x, (N, D), dtype=jnp.float32)
    train_labels = jax.random.randint(k_y, (N,), 0, C)

    # Deterministic parameter init for the wrapped linear classifier.
    w_init = jax.random.normal(k_w, (D, C), dtype=jnp.float32) * 0.05
    b_init = jnp.zeros((1, C), dtype=jnp.float32)

    # Reptile inner loop (forward pass of the module) — one kernel launch.
    loss, acc, updated_params = reptile_forward(
        k_loop, train_x, train_labels, w_init, b_init,
        update_step=UPDATE_STEP, inner_batch_size=INNER_BATCH, lr=LR)
    jax.block_until_ready((loss, acc, updated_params))

    # Correctness: push the SAME sampled batches through the fused kernel and
    # a pure-JAX reference of the whole loop.
    idx = jax.random.randint(k_loop, (UPDATE_STEP, INNER_BATCH), 0, N)
    xs = jnp.take(train_x, idx, axis=0)
    labs = jnp.take(train_labels, idx, axis=0)
    w_k, b_k, l_k, a_k = reptile_inner_loop(xs, labs, w_init, b_init, LR)
    w_r, b_r, l_r, a_r = _reference_loop(xs, labs, w_init, b_init, LR, C)
    np.testing.assert_allclose(np.asarray(w_k), np.asarray(w_r), rtol=1e-5, atol=1e-5)
    np.testing.assert_allclose(np.asarray(b_k), np.asarray(b_r), rtol=1e-5, atol=1e-5)
    np.testing.assert_allclose(float(l_k), float(l_r), rtol=1e-5, atol=1e-5)
    np.testing.assert_allclose(float(a_k), float(a_r), rtol=1e-5, atol=1e-5)

    print("KERNEL_OK")
</pallas_src>

<mosaic_0001>
module attributes {stable_mosaic.version = 11 : i64} {
  func.func @_reptile_fused_kernel(%arg0: memref<1xf32, #tpu.memory_space<smem>>, %arg1: memref<3x8x128xf32, #tpu.memory_space<vmem>>, %arg2: memref<3x8x1xi32, #tpu.memory_space<vmem>>, %arg3: memref<128x128xf32, #tpu.memory_space<vmem>>, %arg4: memref<1x128xf32, #tpu.memory_space<vmem>>, %arg5: memref<128x128xf32, #tpu.memory_space<vmem>>, %arg6: memref<1x128xf32, #tpu.memory_space<vmem>>, %arg7: memref<1x1xf32, #tpu.memory_space<smem>>, %arg8: memref<1x1xf32, #tpu.memory_space<smem>>) attributes {dimension_semantics = [], scalar_prefetch = 0 : i64, scratch_operands = 0 : i64, tpu.core_type = #tpu.core_type<tc>} {
    %c0 = arith.constant 0 : index
    %0 = memref.load %arg0[%c0] : memref<1xf32, #tpu.memory_space<smem>>
    %1 = tpu.iota {dimensions = array<i32: 1>} : vector<8x128xi32>
    %c0_0 = arith.constant 0 : index
    %c0_1 = arith.constant 0 : index
    %2 = vector.load %arg3[%c0_0, %c0_1] : memref<128x128xf32, #tpu.memory_space<vmem>>, vector<128x128xf32>
    %c0_2 = arith.constant 0 : index
    %c0_3 = arith.constant 0 : index
    %3 = vector.load %arg4[%c0_2, %c0_3] : memref<1x128xf32, #tpu.memory_space<vmem>>, vector<1x128xf32>
    %cst = arith.constant 1.250000e-01 : f32
    %c0_i32 = arith.constant 0 : i32
    %4 = arith.index_cast %c0_i32 : i32 to index
    %c0_4 = arith.constant 0 : index
    %c0_5 = arith.constant 0 : index
    %5 = vector.load %arg1[%4, %c0_4, %c0_5] : memref<3x8x128xf32, #tpu.memory_space<vmem>>, vector<1x8x128xf32>
    %6 = vector.shape_cast %5 : vector<1x8x128xf32> to vector<8x128xf32>
    %7 = arith.index_cast %c0_i32 : i32 to index
    %c0_6 = arith.constant 0 : index
    %c0_7 = arith.constant 0 : index
    %8 = vector.load %arg2[%7, %c0_6, %c0_7] : memref<3x8x1xi32, #tpu.memory_space<vmem>>, vector<1x8x1xi32>
    %9 = vector.shape_cast %8 : vector<1x8x1xi32> to vector<8x1xi32>
    %10 = vector.broadcast %9 : vector<8x1xi32> to vector<8x128xi32>
    %11 = arith.cmpi eq, %1, %10 : vector<8x128xi32>
    %12 = arith.extui %11 : vector<8x128xi1> to vector<8x128xi32>
    %13 = arith.sitofp %12 : vector<8x128xi32> to vector<8x128xf32>
    %cst_8 = arith.constant dense<0.000000e+00> : vector<8x128xf32>
    %14 = tpu.matmul %6, %2, %cst_8 {dimension_numbers = #tpu.dot_dimension_numbers<[1], [0], [0], [1], [0, 0, 1, 1], [], []>} : vector<8x128xf32>, vector<128x128xf32>, vector<8x128xf32> -> vector<8x128xf32>
    %15 = vector.broadcast %3 : vector<1x128xf32> to vector<8x128xf32>
    %16 = arith.addf %14, %15 : vector<8x128xf32>
    %cst_9 = arith.constant dense<0xFF800000> : vector<8xf32>
    %17 = vector.multi_reduction <maximumf>, %16, %cst_9 [1] : vector<8x128xf32> to vector<8xf32>
    %18 = vector.shape_cast %17 : vector<8xf32> to vector<8x1xf32>
    %19 = vector.broadcast %18 : vector<8x1xf32> to vector<8x128xf32>
    %20 = arith.subf %16, %19 : vector<8x128xf32>
    %21 = math.exp %20 : vector<8x128xf32>
    %cst_10 = arith.constant dense<0.000000e+00> : vector<8xf32>
    %22 = vector.multi_reduction <add>, %21, %cst_10 [1] : vector<8x128xf32> to vector<8xf32>
    %23 = vector.shape_cast %22 : vector<8xf32> to vector<8x1xf32>
    %24 = tpu.reciprocal %23 : vector<8x1xf32> -> vector<8x1xf32>
    %25 = vector.broadcast %24 : vector<8x1xf32> to vector<8x128xf32>
    %26 = arith.mulf %21, %25 : vector<8x128xf32>
    %27 = arith.subf %26, %13 : vector<8x128xf32>
    %28 = vector.broadcast %cst : f32 to vector<8x128xf32>
    %29 = arith.mulf %27, %28 : vector<8x128xf32>
    %cst_11 = arith.constant dense<0.000000e+00> : vector<128x128xf32>
    %30 = tpu.matmul %6, %29, %cst_11 {dimension_numbers = #tpu.dot_dimension_numbers<[0], [0], [1], [1], [0, 1, 1, 1], [], []>} : vector<8x128xf32>, vector<8x128xf32>, vector<128x128xf32> -> vector<128x128xf32>
    %cst_12 = arith.constant dense<0.000000e+00> : vector<128xf32>
    %31 = vector.multi_reduction <add>, %29, %cst_12 [0] : vector<8x128xf32> to vector<128xf32>
    %32 = vector.shape_cast %31 : vector<128xf32> to vector<1x128xf32>
    %33 = vector.broadcast %0 : f32 to vector<128x128xf32>
    %34 = arith.mulf %33, %30 : vector<128x128xf32>
    %35 = arith.subf %2, %34 : vector<128x128xf32>
    %36 = vector.broadcast %0 : f32 to vector<1x128xf32>
    %37 = arith.mulf %36, %32 : vector<1x128xf32>
    %38 = arith.subf %3, %37 : vector<1x128xf32>
    %c1_i32 = arith.constant 1 : i32
    %39 = arith.index_cast %c1_i32 : i32 to index
    %c0_13 = arith.constant 0 : index
    %c0_14 = arith.constant 0 : index
    %40 = vector.load %arg1[%39, %c0_13, %c0_14] : memref<3x8x128xf32, #tpu.memory_space<vmem>>, vector<1x8x128xf32>
    %41 = vector.shape_cast %40 : vector<1x8x128xf32> to vector<8x128xf32>
    %42 = arith.index_cast %c1_i32 : i32 to index
    %c0_15 = arith.constant 0 : index
    %c0_16 = arith.constant 0 : index
    %43 = vector.load %arg2[%42, %c0_15, %c0_16] : memref<3x8x1xi32, #tpu.memory_space<vmem>>, vector<1x8x1xi32>
    %44 = vector.shape_cast %43 : vector<1x8x1xi32> to vector<8x1xi32>
    %45 = vector.broadcast %44 : vector<8x1xi32> to vector<8x128xi32>
    %46 = arith.cmpi eq, %1, %45 : vector<8x128xi32>
    %47 = arith.extui %46 : vector<8x128xi1> to vector<8x128xi32>
    %48 = arith.sitofp %47 : vector<8x128xi32> to vector<8x128xf32>
    %cst_17 = arith.constant dense<0.000000e+00> : vector<8x128xf32>
    %49 = tpu.matmul %41, %35, %cst_17 {dimension_numbers = #tpu.dot_dimension_numbers<[1], [0], [0], [1], [0, 0, 1, 1], [], []>} : vector<8x128xf32>, vector<128x128xf32>, vector<8x128xf32> -> vector<8x128xf32>
    %50 = vector.broadcast %38 : vector<1x128xf32> to vector<8x128xf32>
    %51 = arith.addf %49, %50 : vector<8x128xf32>
    %cst_18 = arith.constant dense<0xFF800000> : vector<8xf32>
    %52 = vector.multi_reduction <maximumf>, %51, %cst_18 [1] : vector<8x128xf32> to vector<8xf32>
    %53 = vector.shape_cast %52 : vector<8xf32> to vector<8x1xf32>
    %54 = vector.broadcast %53 : vector<8x1xf32> to vector<8x128xf32>
    %55 = arith.subf %51, %54 : vector<8x128xf32>
    %56 = math.exp %55 : vector<8x128xf32>
    %cst_19 = arith.constant dense<0.000000e+00> : vector<8xf32>
    %57 = vector.multi_reduction <add>, %56, %cst_19 [1] : vector<8x128xf32> to vector<8xf32>
    %58 = vector.shape_cast %57 : vector<8xf32> to vector<8x1xf32>
    %59 = tpu.reciprocal %58 : vector<8x1xf32> -> vector<8x1xf32>
    %60 = vector.broadcast %59 : vector<8x1xf32> to vector<8x128xf32>
    %61 = arith.mulf %56, %60 : vector<8x128xf32>
    %62 = arith.subf %61, %48 : vector<8x128xf32>
    %63 = vector.broadcast %cst : f32 to vector<8x128xf32>
    %64 = arith.mulf %62, %63 : vector<8x128xf32>
    %cst_20 = arith.constant dense<0.000000e+00> : vector<128x128xf32>
    %65 = tpu.matmul %41, %64, %cst_20 {dimension_numbers = #tpu.dot_dimension_numbers<[0], [0], [1], [1], [0, 1, 1, 1], [], []>} : vector<8x128xf32>, vector<8x128xf32>, vector<128x128xf32> -> vector<128x128xf32>
    %cst_21 = arith.constant dense<0.000000e+00> : vector<128xf32>
    %66 = vector.multi_reduction <add>, %64, %cst_21 [0] : vector<8x128xf32> to vector<128xf32>
    %67 = vector.shape_cast %66 : vector<128xf32> to vector<1x128xf32>
    %68 = vector.broadcast %0 : f32 to vector<128x128xf32>
    %69 = arith.mulf %68, %65 : vector<128x128xf32>
    %70 = arith.subf %35, %69 : vector<128x128xf32>
    %71 = vector.broadcast %0 : f32 to vector<1x128xf32>
    %72 = arith.mulf %71, %67 : vector<1x128xf32>
    %73 = arith.subf %38, %72 : vector<1x128xf32>
    %c2_i32 = arith.constant 2 : i32
    %c2 = arith.constant 2 : index
    %c0_22 = arith.constant 0 : index
    %c0_23 = arith.constant 0 : index
    %74 = vector.load %arg1[%c2, %c0_22, %c0_23] : memref<3x8x128xf32, #tpu.memory_space<vmem>>, vector<1x8x128xf32>
    %75 = vector.shape_cast %74 : vector<1x8x128xf32> to vector<8x128xf32>
    %c2_24 = arith.constant 2 : index
    %c0_25 = arith.constant 0 : index
    %c0_26 = arith.constant 0 : index
    %76 = vector.load %arg2[%c2_24, %c0_25, %c0_26] : memref<3x8x1xi32, #tpu.memory_space<vmem>>, vector<1x8x1xi32>
    %77 = vector.shape_cast %76 : vector<1x8x1xi32> to vector<8x1xi32>
    %78 = vector.broadcast %77 : vector<8x1xi32> to vector<8x128xi32>
    %79 = arith.cmpi eq, %1, %78 : vector<8x128xi32>
    %80 = arith.extui %79 : vector<8x128xi1> to vector<8x128xi32>
    %81 = arith.sitofp %80 : vector<8x128xi32> to vector<8x128xf32>
    %cst_27 = arith.constant dense<0.000000e+00> : vector<8x128xf32>
    %82 = tpu.matmul %75, %70, %cst_27 {dimension_numbers = #tpu.dot_dimension_numbers<[1], [0], [0], [1], [0, 0, 1, 1], [], []>} : vector<8x128xf32>, vector<128x128xf32>, vector<8x128xf32> -> vector<8x128xf32>
    %83 = vector.broadcast %73 : vector<1x128xf32> to vector<8x128xf32>
    %84 = arith.addf %82, %83 : vector<8x128xf32>
    %cst_28 = arith.constant dense<0xFF800000> : vector<8xf32>
    %85 = vector.multi_reduction <maximumf>, %84, %cst_28 [1] : vector<8x128xf32> to vector<8xf32>
    %86 = vector.shape_cast %85 : vector<8xf32> to vector<8x1xf32>
    %87 = vector.broadcast %86 : vector<8x1xf32> to vector<8x128xf32>
    %88 = arith.subf %84, %87 : vector<8x128xf32>
    %89 = math.exp %88 : vector<8x128xf32>
    %cst_29 = arith.constant dense<0.000000e+00> : vector<8xf32>
    %90 = vector.multi_reduction <add>, %89, %cst_29 [1] : vector<8x128xf32> to vector<8xf32>
    %91 = vector.shape_cast %90 : vector<8xf32> to vector<8x1xf32>
    %92 = tpu.reciprocal %91 : vector<8x1xf32> -> vector<8x1xf32>
    %93 = vector.broadcast %92 : vector<8x1xf32> to vector<8x128xf32>
    %94 = arith.mulf %89, %93 : vector<8x128xf32>
    %95 = arith.subf %94, %81 : vector<8x128xf32>
    %cst_30 = arith.constant 1.250000e-01 : f32
    %96 = vector.broadcast %cst_30 : f32 to vector<8x128xf32>
    %97 = arith.mulf %95, %96 : vector<8x128xf32>
    %cst_31 = arith.constant dense<0.000000e+00> : vector<128x128xf32>
    %98 = tpu.matmul %75, %97, %cst_31 {dimension_numbers = #tpu.dot_dimension_numbers<[0], [0], [1], [1], [0, 1, 1, 1], [], []>} : vector<8x128xf32>, vector<8x128xf32>, vector<128x128xf32> -> vector<128x128xf32>
    %cst_32 = arith.constant dense<0.000000e+00> : vector<128xf32>
    %99 = vector.multi_reduction <add>, %97, %cst_32 [0] : vector<8x128xf32> to vector<128xf32>
    %100 = vector.shape_cast %99 : vector<128xf32> to vector<1x128xf32>
    %101 = vector.broadcast %0 : f32 to vector<128x128xf32>
    %102 = arith.mulf %101, %98 : vector<128x128xf32>
    %103 = arith.subf %70, %102 : vector<128x128xf32>
    %104 = vector.broadcast %0 : f32 to vector<1x128xf32>
    %105 = arith.mulf %104, %100 : vector<1x128xf32>
    %106 = arith.subf %73, %105 : vector<1x128xf32>
    %c0_33 = arith.constant 0 : index
    %c0_34 = arith.constant 0 : index
    %107 = vector.load %arg5[%c0_33, %c0_34] : memref<128x128xf32, #tpu.memory_space<vmem>>, vector<128x128xf32>
    tpu.vector_store %arg5[%c0_33, %c0_34], %103 {strides = array<i32>} : memref<128x128xf32, #tpu.memory_space<vmem>>, vector<128x128xf32>,
    %c0_35 = arith.constant 0 : index
    %c0_36 = arith.constant 0 : index
    %108 = vector.load %arg6[%c0_35, %c0_36] : memref<1x128xf32, #tpu.memory_space<vmem>>, vector<1x128xf32>
    tpu.vector_store %arg6[%c0_35, %c0_36], %106 {strides = array<i32>} : memref<1x128xf32, #tpu.memory_space<vmem>>, vector<1x128xf32>,
    %109 = vector.broadcast %86 : vector<8x1xf32> to vector<8x128xf32>
    %110 = arith.subf %84, %109 : vector<8x128xf32>
    %111 = math.log %91 : vector<8x1xf32>
    %112 = vector.broadcast %111 : vector<8x1xf32> to vector<8x128xf32>
    %113 = arith.subf %110, %112 : vector<8x128xf32>
    %114 = arith.mulf %81, %113 : vector<8x128xf32>
    %115 = vector.shape_cast %114 : vector<8x128xf32> to vector<1x8x128xf32>
    %cst_37 = arith.constant dense<0.000000e+00> : vector<1xf32>
    %116 = vector.multi_reduction <add>, %115, %cst_37 [1, 2] : vector<1x8x128xf32> to vector<1xf32>
    %117 = vector.shape_cast %116 : vector<1xf32> to vector<1x1x1xf32>
    %118 = vector.extract %117[0, 0, 0] : f32 from vector<1x1x1xf32>
    %cst_38 = arith.constant 0.000000e+00 : f32
    %119 = arith.subf %cst_38, %118 : f32
    %cst_39 = arith.constant 1.250000e-01 : f32
    %120 = arith.mulf %119, %cst_39 : f32
    %c0_40 = arith.constant 0 : index
    %c0_41 = arith.constant 0 : index
    %121 = memref.load %arg7[%c0_40, %c0_41] : memref<1x1xf32, #tpu.memory_space<smem>>
    memref.store %120, %arg7[%c0_40, %c0_41] : memref<1x1xf32, #tpu.memory_space<smem>>
    %122 = vector.broadcast %86 : vector<8x1xf32> to vector<8x128xf32>
    %123 = arith.cmpf oge, %84, %122 : vector<8x128xf32>
    %c128_i32 = arith.constant 128 : i32
    %124 = vector.broadcast %c128_i32 : i32 to vector<8x128xi32>
    %125 = arith.select %123, %1, %124 : vector<8x128xi1>, vector<8x128xi32>
    %cst_42 = arith.constant dense<2147483647> : vector<8xi32>
    %126 = vector.multi_reduction <minsi>, %125, %cst_42 [1] : vector<8x128xi32> to vector<8xi32>
    %127 = vector.shape_cast %126 : vector<8xi32> to vector<8x1xi32>
    %128 = arith.cmpi eq, %127, %77 : vector<8x1xi32>
    %129 = arith.extui %128 : vector<8x1xi1> to vector<8x1xi32>
    %130 = arith.sitofp %129 : vector<8x1xi32> to vector<8x1xf32>
    %131 = vector.shape_cast %130 : vector<8x1xf32> to vector<1x8x1xf32>
    %cst_43 = arith.constant dense<0.000000e+00> : vector<1xf32>
    %132 = vector.multi_reduction <add>, %131, %cst_43 [1, 2] : vector<1x8x1xf32> to vector<1xf32>
    %133 = vector.shape_cast %132 : vector<1xf32> to vector<1x1x1xf32>
    %134 = vector.extract %133[0, 0, 0] : f32 from vector<1x1x1xf32>
    %cst_44 = arith.constant 1.250000e-01 : f32
    %135 = arith.mulf %134, %cst_44 : f32
    %c0_45 = arith.constant 0 : index
    %c0_46 = arith.constant 0 : index
    %136 = memref.load %arg8[%c0_45, %c0_46] : memref<1x1xf32, #tpu.memory_space<smem>>
    memref.store %135, %arg8[%c0_45, %c0_46] : memref<1x1xf32, #tpu.memory_space<smem>>
    return
  }
}

</mosaic_0001>

<llo_original>
// kernel: tpu_custom_call.1
$region0: #{tpu_custom_call.1}
  #allocation0 [shape = 'u32[]', space=smem, size = 0x4, offset = 0x4, fixed_abs, tag = 'smem constant byte address 0x4 - core index']
  #allocation1 [shape = 'u32[144,128]{1,0:T(1,128)}', space=vmem, size = 0x12000, scoped, tag = 'internal scratch']
  #allocation2 [shape = 'f32[1]{0:T(128)S(6)}', space=smem, size = 0x200, scoped, tag = 'scoped memory for tpu_custom_call.1']
  %s0 = inlined_call_operand.<no memory space> [shape: f32[1], index: 0, kind: input, shape index: {}]
  %s1 = inlined_call_operand.vmem [shape: f32[3,8,128], index: 1, kind: input, shape index: {}]
  %s2 = inlined_call_operand.vmem [shape: s32[3,8,1], index: 2, kind: input, shape index: {}]
  %s3 = inlined_call_operand.hbm [shape: f32[128,128], index: 3, kind: input, shape index: {}, may-alias: {3,5}]
  %s4 = inlined_call_operand.hbm [shape: f32[1,128], index: 4, kind: input, shape index: {}, may-alias: {4,6}]
  %s5 = inlined_call_operand.hbm [shape: f32[128,128], index: 5, kind: output, shape index: {0}, may-alias: {3,5}]
  %s6 = inlined_call_operand.hbm [shape: f32[1,128], index: 6, kind: output, shape index: {1}, may-alias: {4,6}]
  %s7 = inlined_call_operand.hbm [shape: f32[1,1], index: 7, kind: output, shape index: {2}]
  %s8 = inlined_call_operand.hbm [shape: f32[1,1], index: 8, kind: output, shape index: {3}]
  %9 = xla_tuple %s5, %s6, %s7, %s8
  %s10 = sld [smem:[#allocation0]]
  $region62: #{tpu_custom_call.1} parent=0
    _
  %s12 = ssub.s32 1, %s10
  %s13 = scalar_select 0, %s12, %s10
  %14 = sst [smem:[#allocation2]] %s0
  $region1: #{tpu_custom_call.1} parent=0
    #allocation3 [shape = 'u8[65536]{0}', space=vmem, size = 0x10000, scoped, tag = 'input window, operand 3, single buffered']
    #allocation4 [shape = 's32[1]{0}', space=sflag, size = 0x4, scoped, tag = 'scoped memory for tpu_custom_call.1']
    #allocation5 [shape = 's32[1]{0}', space=sflag, size = 0x4, scoped, tag = 'scoped memory for tpu_custom_call.1']
    #allocation6 [shape = 's32[1]{0}', space=sflag, size = 0x4, scoped, tag = 'scoped memory for tpu_custom_call.1']
    #allocation7 [shape = 'u8[512]{0}', space=vmem, size = 0x400, scoped, tag = 'input window, operand 4, single buffered']
    #allocation8 [shape = 's32[1]{0}', space=sflag, size = 0x4, scoped, tag = 'scoped memory for tpu_custom_call.1']
    #allocation9 [shape = 'u8[65536]{0}', space=vmem, size = 0x10000, scoped, tag = 'output window, operand 0, single buffered']
    #allocation10 [shape = 'u8[512]{0}', space=vmem, size = 0x400, scoped, tag = 'output window, operand 1, single buffered']
    #allocation11 [shape = 's32[1]{0}', space=sflag, size = 0x4, scoped, tag = 'scoped memory for tpu_custom_call.1']
    #allocation12 [shape = 'u8[512]{0}', space=smem, size = 0x200, scoped, tag = 'output window, operand 2, single buffered']
    #allocation13 [shape = 'u8[512]{0}', space=smem, size = 0x200, scoped, tag = 'output window, operand 3, single buffered']
    #allocation14 [shape = 's32[1]{0}', space=sflag, size = 0x4, scoped, tag = 'scoped memory for tpu_custom_call.1']
    %15 = vsyncpa [#allocation4], 0
    %16 = vsyncpa [#allocation8], 0
    %17 = vsyncpa [#allocation5], 0
    %18 = vsyncpa [#allocation11], 0
    %19 = vsyncpa [#allocation6], 0
    %20 = vsyncpa [#allocation14], 0
    // Predicated region
    $region2: #{tpu_custom_call.1} parent=1 // pred_check
      _
    $region3: #{tpu_custom_call.1} parent=1 // pred_check_branch
      %22 = sbr.rel (0) target = $region5
    $region4: #{tpu_custom_call.1} parent=1 // pred_region
      _
    $region5: #{tpu_custom_call.1} parent=1 // pred_fallthru
      _
    // Predicated region
    $region6: #{tpu_custom_call.1} parent=1 // pred_check
      _
    $region7: #{tpu_custom_call.1} parent=1 // pred_check_branch
      %24 = sbr.rel (0) target = $region9
    $region8: #{tpu_custom_call.1} parent=1 // pred_region
      _
    $region9: #{tpu_custom_call.1} parent=1 // pred_fallthru
      _
    // Predicated region
    $region10: #{tpu_custom_call.1} parent=1 // pred_check
      _
    $region11: #{tpu_custom_call.1} parent=1 // pred_check_branch
      %26 = sbr.rel (0) target = $region13
    $region12: #{tpu_custom_call.1} parent=1 // pred_region
      _
    $region13: #{tpu_custom_call.1} parent=1 // pred_fallthru
      _
    // Predicated region
    $region14: #{tpu_custom_call.1} parent=1 // pred_check
      _
    $region15: #{tpu_custom_call.1} parent=1 // pred_check_branch
      %28 = sbr.rel (0) target = $region17
    $region16: #{tpu_custom_call.1} parent=1 // pred_region
      %s30 = ssub.s32 2048, 2048
      %31 = vsyncadd [#allocation4], %s30
      %s32 = sshll.u32 [#allocation3], 4
      %s33 = int_to_ptr.vmem [resolvable:$true] %s32
      %38 = dma.hbm_to_vmem [thread:$0]  %s3, 2048, %s33, [#allocation4], 128, 128, 8
    $region17: #{tpu_custom_call.1} parent=1 // pred_fallthru
      _
    // Predicated region
    $region18: #{tpu_custom_call.1} parent=1 // pred_check
      _
    $region19: #{tpu_custom_call.1} parent=1 // pred_check_branch
      %40 = sbr.rel (0) target = $region21
    $region20: #{tpu_custom_call.1} parent=1 // pred_region
      %s42 = ssub.s32 16, 16
      %43 = vsyncadd [#allocation8], %s42
      %s45 = sshll.u32 [#allocation7], 4
      %s46 = int_to_ptr.vmem [resolvable:$true] %s45
      %48 = dma.hbm_to_vmem [thread:$0]  %s4, 16, %s46, [#allocation8]
    $region21: #{tpu_custom_call.1} parent=1 // pred_fallthru
      _
    // Predicated region
    $region22: #{tpu_custom_call.1} parent=1 // pred_check
      _
    $region23: #{tpu_custom_call.1} parent=1 // pred_check_branch
      %50 = sbr.rel (0) target = $region25
    $region24: #{tpu_custom_call.1} parent=1 // pred_region
      %51 = dma.done [#allocation4], 2048
    $region25: #{tpu_custom_call.1} parent=1 // pred_fallthru
      _
    // Predicated region
    $region26: #{tpu_custom_call.1} parent=1 // pred_check
      _
    $region27: #{tpu_custom_call.1} parent=1 // pred_check_branch
      %53 = sbr.rel (0) target = $region29
    $region28: #{tpu_custom_call.1} parent=1 // pred_region
      %54 = dma.done [#allocation8], 16
    $region29: #{tpu_custom_call.1} parent=1 // pred_fallthru
      _
    %s55 = sld [smem:[#allocation2]]
    %v56 = vlaneseq
    %v57 = vand.u32 %v56, 127
    %v58 = vld [vmem:[#allocation3] sm:$0xff]
    %v59 = vld [vmem:[#allocation3 + $0x8] sm:$0xff]
    %v60 = vld [vmem:[#allocation3 + $0x10] sm:$0xff]
    %v61 = vld [vmem:[#allocation3 + $0x18] sm:$0xff]
    %v62 = vld [vmem:[#allocation3 + $0x20] sm:$0xff]
    %v63 = vld [vmem:[#allocation3 + $0x28] sm:$0xff]
    %v64 = vld [vmem:[#allocation3 + $0x30] sm:$0xff]
    %v65 = vld [vmem:[#allocation3 + $0x38] sm:$0xff]
    %v66 = vld [vmem:[#allocation3 + $0x40] sm:$0xff]
    %v67 = vld [vmem:[#allocation3 + $0x48] sm:$0xff]
    %v68 = vld [vmem:[#allocation3 + $0x50] sm:$0xff]
    %v69 = vld [vmem:[#allocation3 + $0x58] sm:$0xff]
    %v70 = vld [vmem:[#allocation3 + $0x60] sm:$0xff]
    %v71 = vld [vmem:[#allocation3 + $0x68] sm:$0xff]
    %v72 = vld [vmem:[#allocation3 + $0x70] sm:$0xff]
    %v73 = vld [vmem:[#allocation3 + $0x78] sm:$0xff]
    %v74 = vld [vmem:[#allocation7] sm:$0x1]
    %v75 = vld [vmem:[%s1] sm:$0xff]
    %v76 = vld [vmem:[%s2] sm:$0xff]
    %77 = vset.pattern.permute.xlu0 0
    %78 = vperm.xlu0 %77, %v76
    %v79 = vpop.permute.xlu0 %78
    %vm80 = vcmp.eq.s32.totalorder %v57, %v79
    %v81 = vsel %vm80, 1, 0
    %v82 = vcvt.s32.f32 %v81
    %v84 = vlaneseq
    %v85 = vshrl.u32 %v84, 7
    %v86 = vsub.s32 0, %v85
    %v87 = vrot.slane %v74, %v86
    %89 = vmatprep.subr.mxu0 0.0
    %90 = vmatpush1.msra.mxu0 %v58
    %91 = vmatprep.subr.mxu0 0.0
    %92 = vmatpush1.msra.mxu0 %v59
    %93 = vmatprep.subr.mxu0 0.0
    %94 = vmatpush1.msra.mxu0 %v60
    %95 = vmatprep.subr.mxu0 0.0
    %96 = vmatpush1.msra.mxu0 %v61
    %97 = vmatprep.subr.mxu0 0.0
    %98 = vmatpush1.msra.mxu0 %v62
    %99 = vmatprep.subr.mxu0 0.0
    %100 = vmatpush1.msra.mxu0 %v63
    %101 = vmatprep.subr.mxu0 0.0
    %102 = vmatpush1.msra.mxu0 %v64
    %103 = vmatprep.subr.mxu0 0.0
    %104 = vmatpush1.msra.mxu0 %v65
    %105 = vmatprep.subr.mxu0 0.0
    %106 = vmatpush1.msra.mxu0 %v66
    %107 = vmatprep.subr.mxu0 0.0
    %108 = vmatpush1.msra.mxu0 %v67
    %109 = vmatprep.subr.mxu0 0.0
    %110 = vmatpush1.msra.mxu0 %v68
    %111 = vmatprep.subr.mxu0 0.0
    %112 = vmatpush1.msra.mxu0 %v69
    %113 = vmatprep.subr.mxu0 0.0
    %114 = vmatpush1.msra.mxu0 %v70
    %115 = vmatprep.subr.mxu0 0.0
    %116 = vmatpush1.msra.mxu0 %v71
    %117 = vmatprep.subr.mxu0 0.0
    %118 = vmatpush1.msra.mxu0 %v72
    %119 = vmatprep.subr.mxu0 0.0
    %120 = vmatpush1.msra.mxu0 %v73
    %121 = vmatprep.subr.mxu0 0.0
    %122 = vmatpush1.msra.mxu0 0.0
    %123 = vmatprep.subr.mxu0 0.0
    %124 = vmatpush1.msra.mxu0 0.0
    %125 = vmatprep.subr.mxu0 0.0
    %126 = vmatpush1.msra.mxu0 0.0
    %127 = vmatprep.subr.mxu0 0.0
    %128 = vmatpush1.msra.mxu0 0.0
    %129 = vmatprep.subr.mxu0 0.0
    %130 = vmatpush1.msra.mxu0 0.0
    %131 = vmatprep.subr.mxu0 0.0
    %132 = vmatpush1.msra.mxu0 0.0
    %133 = vmatprep.subr.mxu0 0.0
    %134 = vmatpush1.msra.mxu0 0.0
    %135 = vmatprep.subr.mxu0 0.0
    %136 = vmatpush1.msra.mxu0 0.0
    %137 = vmatprep.subr.mxu0 0.0
    %138 = vmatpush1.msra.mxu0 0.0
    %139 = vmatprep.subr.mxu0 0.0
    %140 = vmatpush1.msra.mxu0 0.0
    %141 = vmatprep.subr.mxu0 0.0
    %142 = vmatpush1.msra.mxu0 0.0
    %143 = vmatprep.subr.mxu0 0.0
    %144 = vmatpush1.msra.mxu0 0.0
    %145 = vmatprep.subr.mxu0 0.0
    %146 = vmatpush1.msra.mxu0 0.0
    %147 = vmatprep.subr.mxu0 0.0
    %148 = vmatpush1.msra.mxu0 0.0
    %149 = vmatprep.subr.mxu0 0.0
    %150 = vmatpush1.msra.mxu0 0.0
    %151 = vmatprep.subr.mxu0 0.0
    %152 = vmatpush1.msra.mxu0 0.0
    %153 = vmatprep.mubr.f32.mxu0 0.0
    %154 = vmatmul.mubr.f32.gmra.mrb[0].mxu0 %v75
    %v155 = vpop.f32.mrb[0].mxu0
    %v156 = vadd.f32 %v87, %v155
    %v157 = vpop.f32.mrb[0].mxu0
    %158 = vdwg.mxu0
    %159 = vmax.xlane.f32.xlu0 %v156
    %v160 = vpop.xlane.xlu0 %159
    %v161 = vsub.f32 %v156, %v160
    %v162 = vmul.f32 %v161, 1.442695
    %v163 = vpow.pop %v162
    %164 = vadd.xlane.f32.xlu0 %v163
    %v165 = vpop.xlane.xlu0 %164
    %v166 = vrcp.pop %v165
    %v167 = vmul.f32 %v163, %v166
    %v168 = vsub.f32 %v167, %v82
    %v169 = vmul.f32 %v168, 0.125
    %170 = vxpose.xlu0.b32.start [1/16] %v75, 128
    %171 = vxpose.xlu0.b32.cont [2/16] 0.0, 128
    %172 = vxpose.xlu0.b32.cont [3/16] 0.0, 128
    %173 = vxpose.xlu0.b32.cont [4/16] 0.0, 128
    %174 = vxpose.xlu0.b32.cont [5/16] 0.0, 128
    %175 = vxpose.xlu0.b32.cont [6/16] 0.0, 128
    %176 = vxpose.xlu0.b32.cont [7/16] 0.0, 128
    %177 = vxpose.xlu0.b32.cont [8/16] 0.0, 128
    %178 = vxpose.xlu0.b32.cont [9/16] 0.0, 128
    %179 = vxpose.xlu0.b32.cont [10/16] 0.0, 128
    %180 = vxpose.xlu0.b32.cont [11/16] 0.0, 128
    %181 = vxpose.xlu0.b32.cont [12/16] 0.0, 128
    %182 = vxpose.xlu0.b32.cont [13/16] 0.0, 128
    %183 = vxpose.xlu0.b32.cont [14/16] 0.0, 128
    %184 = vxpose.xlu0.b32.cont [15/16] 0.0, 128
    %185 = vxpose.xlu0.b32.end [16/16] 0.0, 128
    %v186 = vpop.trf.xlu0
    %v187 = vpop.trf.xlu0
    %v188 = vpop.trf.xlu0
    %v189 = vpop.trf.xlu0
    %v190 = vpop.trf.xlu0
    %v191 = vpop.trf.xlu0
    %v192 = vpop.trf.xlu0
    %v193 = vpop.trf.xlu0
    %v194 = vpop.trf.xlu0
    %v195 = vpop.trf.xlu0
    %v196 = vpop.trf.xlu0
    %v197 = vpop.trf.xlu0
    %v198 = vpop.trf.xlu0
    %v199 = vpop.trf.xlu0
    %v200 = vpop.trf.xlu0
    %v201 = vpop.trf.xlu0
    %vm202 = vcmask 64512
    %v204 = vsel %vm202, %v186, 0
    %v207 = vsel %vm202, %v187, 0
    %v210 = vsel %vm202, %v188, 0
    %v213 = vsel %vm202, %v189, 0
    %v216 = vsel %vm202, %v190, 0
    %v219 = vsel %vm202, %v191, 0
    %v222 = vsel %vm202, %v192, 0
    %v225 = vsel %vm202, %v193, 0
    %v228 = vsel %vm202, %v194, 0
    %v231 = vsel %vm202, %v195, 0
    %v234 = vsel %vm202, %v196, 0
    %v237 = vsel %vm202, %v197, 0
    %v240 = vsel %vm202, %v198, 0
    %v243 = vsel %vm202, %v199, 0
    %v246 = vsel %vm202, %v200, 0
    %v249 = vsel %vm202, %v201, 0
    %251 = vmatprep.subr.mxu0 0.0
    %252 = vmatpush1.msra.mxu0 %v169
    %253 = vmatprep.subr.mxu0 0.0
    %254 = vmatpush1.msra.mxu0 0.0
    %255 = vmatprep.subr.mxu0 0.0
    %256 = vmatpush1.msra.mxu0 0.0
    %257 = vmatprep.subr.mxu0 0.0
    %258 = vmatpush1.msra.mxu0 0.0
    %259 = vmatprep.subr.mxu0 0.0
    %260 = vmatpush1.msra.mxu0 0.0
    %261 = vmatprep.subr.mxu0 0.0
    %262 = vmatpush1.msra.mxu0 0.0
    %263 = vmatprep.subr.mxu0 0.0
    %264 = vmatpush1.msra.mxu0 0.0
    %265 = vmatprep.subr.mxu0 0.0
    %266 = vmatpush1.msra.mxu0 0.0
    %267 = vmatprep.subr.mxu0 0.0
    %268 = vmatpush1.msra.mxu0 0.0
    %269 = vmatprep.subr.mxu0 0.0
    %270 = vmatpush1.msra.mxu0 0.0
    %271 = vmatprep.subr.mxu0 0.0
    %272 = vmatpush1.msra.mxu0 0.0
    %273 = vmatprep.subr.mxu0 0.0
    %274 = vmatpush1.msra.mxu0 0.0
    %275 = vmatprep.subr.mxu0 0.0
    %276 = vmatpush1.msra.mxu0 0.0
    %277 = vmatprep.subr.mxu0 0.0
    %278 = vmatpush1.msra.mxu0 0.0
    %279 = vmatprep.subr.mxu0 0.0
    %280 = vmatpush1.msra.mxu0 0.0
    %281 = vmatprep.subr.mxu0 0.0
    %282 = vmatpush1.msra.mxu0 0.0
    %283 = vmatprep.subr.mxu0 0.0
    %284 = vmatpush1.msra.mxu0 0.0
    %285 = vmatprep.subr.mxu0 0.0
    %286 = vmatpush1.msra.mxu0 0.0
    %287 = vmatprep.subr.mxu0 0.0
    %288 = vmatpush1.msra.mxu0 0.0
    %289 = vmatprep.subr.mxu0 0.0
    %290 = vmatpush1.msra.mxu0 0.0
    %291 = vmatprep.subr.mxu0 0.0
    %292 = vmatpush1.msra.mxu0 0.0
    %293 = vmatprep.subr.mxu0 0.0
    %294 = vmatpush1.msra.mxu0 0.0
    %295 = vmatprep.subr.mxu0 0.0
    %296 = vmatpush1.msra.mxu0 0.0
    %297 = vmatprep.subr.mxu0 0.0
    %298 = vmatpush1.msra.mxu0 0.0
    %299 = vmatprep.subr.mxu0 0.0
    %300 = vmatpush1.msra.mxu0 0.0
    %301 = vmatprep.subr.mxu0 0.0
    %302 = vmatpush1.msra.mxu0 0.0
    %303 = vmatprep.subr.mxu0 0.0
    %304 = vmatpush1.msra.mxu0 0.0
    %305 = vmatprep.subr.mxu0 0.0
    %306 = vmatpush1.msra.mxu0 0.0
    %307 = vmatprep.subr.mxu0 0.0
    %308 = vmatpush1.msra.mxu0 0.0
    %309 = vmatprep.subr.mxu0 0.0
    %310 = vmatpush1.msra.mxu0 0.0
    %311 = vmatprep.subr.mxu0 0.0
    %312 = vmatpush1.msra.mxu0 0.0
    %313 = vmatprep.subr.mxu0 0.0
    %314 = vmatpush1.msra.mxu0 0.0
    %315 = vmatprep.mubr.f32.mxu0 0.0
    %316 = vmatmul.mubr.f32.gmra.mrb[0].mxu0 %v204
    %v317 = vpop.f32.mrb[0].mxu0
    %v318 = vadd.f32 0.0, %v317
    %v319 = vpop.f32.mrb[0].mxu0
    %320 = vmatprep.mubr.f32.mxu0 0.0
    %321 = vmatmul.mubr.f32.gmra.mrb[0].mxu0 %v207
    %v322 = vpop.f32.mrb[0].mxu0
    %v323 = vadd.f32 0.0, %v322
    %v324 = vpop.f32.mrb[0].mxu0
    %325 = vmatprep.mubr.f32.mxu0 0.0
    %326 = vmatmul.mubr.f32.gmra.mrb[0].mxu0 %v210
    %v327 = vpop.f32.mrb[0].mxu0
    %v328 = vadd.f32 0.0, %v327
    %v329 = vpop.f32.mrb[0].mxu0
    %330 = vmatprep.mubr.f32.mxu0 0.0
    %331 = vmatmul.mubr.f32.gmra.mrb[0].mxu0 %v213
    %v332 = vpop.f32.mrb[0].mxu0
    %v333 = vadd.f32 0.0, %v332
    %v334 = vpop.f32.mrb[0].mxu0
    %335 = vmatprep.mubr.f32.mxu0 0.0
    %336 = vmatmul.mubr.f32.gmra.mrb[0].mxu0 %v216
    %v337 = vpop.f32.mrb[0].mxu0
    %v338 = vadd.f32 0.0, %v337
    %v339 = vpop.f32.mrb[0].mxu0
    %340 = vmatprep.mubr.f32.mxu0 0.0
    %341 = vmatmul.mubr.f32.gmra.mrb[0].mxu0 %v219
    %v342 = vpop.f32.mrb[0].mxu0
    %v343 = vadd.f32 0.0, %v342
    %v344 = vpop.f32.mrb[0].mxu0
    %345 = vmatprep.mubr.f32.mxu0 0.0
    %346 = vmatmul.mubr.f32.gmra.mrb[0].mxu0 %v222
    %v347 = vpop.f32.mrb[0].mxu0
    %v348 = vadd.f32 0.0, %v347
    %v349 = vpop.f32.mrb[0].mxu0
    %350 = vmatprep.mubr.f32.mxu0 0.0
    %351 = vmatmul.mubr.f32.gmra.mrb[0].mxu0 %v225
    %v352 = vpop.f32.mrb[0].mxu0
    %v353 = vadd.f32 0.0, %v352
    %v354 = vpop.f32.mrb[0].mxu0
    %355 = vmatprep.mubr.f32.mxu0 0.0
    %356 = vmatmul.mubr.f32.gmra.mrb[0].mxu0 %v228
    %v357 = vpop.f32.mrb[0].mxu0
    %v358 = vadd.f32 0.0, %v357
    %v359 = vpop.f32.mrb[0].mxu0
    %360 = vmatprep.mubr.f32.mxu0 0.0
    %361 = vmatmul.mubr.f32.gmra.mrb[0].mxu0 %v231
    %v362 = vpop.f32.mrb[0].mxu0
    %v363 = vadd.f32 0.0, %v362
    %v364 = vpop.f32.mrb[0].mxu0
    %365 = vmatprep.mubr.f32.mxu0 0.0
    %366 = vmatmul.mubr.f32.gmra.mrb[0].mxu0 %v234
    %v367 = vpop.f32.mrb[0].mxu0
    %v368 = vadd.f32 0.0, %v367
    %v369 = vpop.f32.mrb[0].mxu0
    %370 = vmatprep.mubr.f32.mxu0 0.0
    %371 = vmatmul.mubr.f32.gmra.mrb[0].mxu0 %v237
    %v372 = vpop.f32.mrb[0].mxu0
    %v373 = vadd.f32 0.0, %v372
    %v374 = vpop.f32.mrb[0].mxu0
    %375 = vmatprep.mubr.f32.mxu0 0.0
    %376 = vmatmul.mubr.f32.gmra.mrb[0].mxu0 %v240
    %v377 = vpop.f32.mrb[0].mxu0
    %v378 = vadd.f32 0.0, %v377
    %v379 = vpop.f32.mrb[0].mxu0
    %380 = vmatprep.mubr.f32.mxu0 0.0
    %381 = vmatmul.mubr.f32.gmra.mrb[0].mxu0 %v243
    %v382 = vpop.f32.mrb[0].mxu0
    %v383 = vadd.f32 0.0, %v382
    %v384 = vpop.f32.mrb[0].mxu0
    %385 = vmatprep.mubr.f32.mxu0 0.0
    %386 = vmatmul.mubr.f32.gmra.mrb[0].mxu0 %v246
    %v387 = vpop.f32.mrb[0].mxu0
    %v388 = vadd.f32 0.0, %v387
    %v389 = vpop.f32.mrb[0].mxu0
    %390 = vmatprep.mubr.f32.mxu0 0.0
    %391 = vmatmul.mubr.f32.gmra.mrb[0].mxu0 %v249
    %v392 = vpop.f32.mrb[0].mxu0
    %v393 = vadd.f32 0.0, %v392
    %v394 = vpop.f32.mrb[0].mxu0
    %395 = vdwg.mxu0
    %v396 = vrot.slane %v169, 4
    %v397 = vadd.f32 %v169, %v396
    %v398 = vrot.slane %v397, 2
    %v399 = vadd.f32 %v397, %v398
    %v400 = vrot.slane %v399, 1
    %v401 = vadd.f32 %v399, %v400
    %v402 = vstv %s55
    %v403 = vmul.f32 %v402, %v318
    %v404 = vmul.f32 %v402, %v323
    %v405 = vmul.f32 %v402, %v328
    %v406 = vmul.f32 %v402, %v333
    %v407 = vmul.f32 %v402, %v338
    %v408 = vmul.f32 %v402, %v343
    %v409 = vmul.f32 %v402, %v348
    %v410 = vmul.f32 %v402, %v353
    %v411 = vmul.f32 %v402, %v358
    %v412 = vmul.f32 %v402, %v363
    %v413 = vmul.f32 %v402, %v368
    %v414 = vmul.f32 %v402, %v373
    %v415 = vmul.f32 %v402, %v378
    %v416 = vmul.f32 %v402, %v383
    %v417 = vmul.f32 %v402, %v388
    %v418 = vmul.f32 %v402, %v393
    %v419 = vsub.f32 %v58, %v403
    %v420 = vsub.f32 %v59, %v404
    %v421 = vsub.f32 %v60, %v405
    %v422 = vsub.f32 %v61, %v406
    %v423 = vsub.f32 %v62, %v407
    %v424 = vsub.f32 %v63, %v408
    %v425 = vsub.f32 %v64, %v409
    %v426 = vsub.f32 %v65, %v410
    %v427 = vsub.f32 %v66, %v411
    %v428 = vsub.f32 %v67, %v412
    %v429 = vsub.f32 %v68, %v413
    %v430 = vsub.f32 %v69, %v414
    %v431 = vsub.f32 %v70, %v415
    %v432 = vsub.f32 %v71, %v416
    %v433 = vsub.f32 %v72, %v417
    %v434 = vsub.f32 %v73, %v418
    %v435 = vmul.f32 %v402, %v401
    %v436 = vsub.f32 %v74, %v435
    %s437 = scalar_lea.vmem %s1, 8
    %v438 = vld [vmem:[%s437] sm:$0xff]
    %s439 = scalar_lea.vmem %s2, 8
    %v440 = vld [vmem:[%s439] sm:$0xff]
    %441 = vset.pattern.permute.xlu0 0
    %442 = vperm.xlu0 %441, %v440
    %v443 = vpop.permute.xlu0 %442
    %vm444 = vcmp.eq.s32.totalorder %v57, %v443
    %v445 = vsel %vm444, 1, 0
    %v446 = vcvt.s32.f32 %v445
    %v448 = vlaneseq
    %v449 = vshrl.u32 %v448, 7
    %v450 = vsub.s32 0, %v449
    %v451 = vrot.slane %v436, %v450
    %453 = vmatprep.subr.mxu0 0.0
    %454 = vmatpush1.msra.mxu0 %v419
    %455 = vmatprep.subr.mxu0 0.0
    %456 = vmatpush1.msra.mxu0 %v420
    %457 = vmatprep.subr.mxu0 0.0
    %458 = vmatpush1.msra.mxu0 %v421
    %459 = vmatprep.subr.mxu0 0.0
    %460 = vmatpush1.msra.mxu0 %v422
    %461 = vmatprep.subr.mxu0 0.0
    %462 = vmatpush1.msra.mxu0 %v423
    %463 = vmatprep.subr.mxu0 0.0
    %464 = vmatpush1.msra.mxu0 %v424
    %465 = vmatprep.subr.mxu0 0.0
    %466 = vmatpush1.msra.mxu0 %v425
    %467 = vmatprep.subr.mxu0 0.0
    %468 = vmatpush1.msra.mxu0 %v426
    %469 = vmatprep.subr.mxu0 0.0
    %470 = vmatpush1.msra.mxu0 %v427
    %471 = vmatprep.subr.mxu0 0.0
    %472 = vmatpush1.msra.mxu0 %v428
    %473 = vmatprep.subr.mxu0 0.0
    %474 = vmatpush1.msra.mxu0 %v429
    %475 = vmatprep.subr.mxu0 0.0
    %476 = vmatpush1.msra.mxu0 %v430
    %477 = vmatprep.subr.mxu0 0.0
    %478 = vmatpush1.msra.mxu0 %v431
    %479 = vmatprep.subr.mxu0 0.0
    %480 = vmatpush1.msra.mxu0 %v432
    %481 = vmatprep.subr.mxu0 0.0
    %482 = vmatpush1.msra.mxu0 %v433
    %483 = vmatprep.subr.mxu0 0.0
    %484 = vmatpush1.msra.mxu0 %v434
    %485 = vmatprep.subr.mxu0 0.0
    %486 = vmatpush1.msra.mxu0 0.0
    %487 = vmatprep.subr.mxu0 0.0
    %488 = vmatpush1.msra.mxu0 0.0
    %489 = vmatprep.subr.mxu0 0.0
    %490 = vmatpush1.msra.mxu0 0.0
    %491 = vmatprep.subr.mxu0 0.0
    %492 = vmatpush1.msra.mxu0 0.0
    %493 = vmatprep.subr.mxu0 0.0
    %494 = vmatpush1.msra.mxu0 0.0
    %495 = vmatprep.subr.mxu0 0.0
    %496 = vmatpush1.msra.mxu0 0.0
    %497 = vmatprep.subr.mxu0 0.0
    %498 = vmatpush1.msra.mxu0 0.0
    %499 = vmatprep.subr.mxu0 0.0
    %500 = vmatpush1.msra.mxu0 0.0
    %501 = vmatprep.subr.mxu0 0.0
    %502 = vmatpush1.msra.mxu0 0.0
    %503 = vmatprep.subr.mxu0 0.0
    %504 = vmatpush1.msra.mxu0 0.0
    %505 = vmatprep.subr.mxu0 0.0
    %506 = vmatpush1.msra.mxu0 0.0
    %507 = vmatprep.subr.mxu0 0.0
    %508 = vmatpush1.msra.mxu0 0.0
    %509 = vmatprep.subr.mxu0 0.0
    %510 = vmatpush1.msra.mxu0 0.0
    %511 = vmatprep.subr.mxu0 0.0
    %512 = vmatpush1.msra.mxu0 0.0
    %513 = vmatprep.subr.mxu0 0.0
    %514 = vmatpush1.msra.mxu0 0.0
    %515 = vmatprep.subr.mxu0 0.0
    %516 = vmatpush1.msra.mxu0 0.0
    %517 = vmatprep.mubr.f32.mxu0 0.0
    %518 = vmatmul.mubr.f32.gmra.mrb[0].mxu0 %v438
    %v519 = vpop.f32.mrb[0].mxu0
    %v520 = vadd.f32 %v451, %v519
    %v521 = vpop.f32.mrb[0].mxu0
    %522 = vdwg.mxu0
    %523 = vmax.xlane.f32.xlu0 %v520
    %v524 = vpop.xlane.xlu0 %523
    %v525 = vsub.f32 %v520, %v524
    %v526 = vmul.f32 %v525, 1.442695
    %v527 = vpow.pop %v526
    %528 = vadd.xlane.f32.xlu0 %v527
    %v529 = vpop.xlane.xlu0 %528
    %v530 = vrcp.pop %v529
    %v531 = vmul.f32 %v527, %v530
    %v532 = vsub.f32 %v531, %v446
    %v533 = vmul.f32 %v532, 0.125
    %534 = vxpose.xlu0.b32.start [1/16] %v438, 128
    %535 = vxpose.xlu0.b32.cont [2/16] 0.0, 128
    %536 = vxpose.xlu0.b32.cont [3/16] 0.0, 128
    %537 = vxpose.xlu0.b32.cont [4/16] 0.0, 128
    %538 = vxpose.xlu0.b32.cont [5/16] 0.0, 128
    %539 = vxpose.xlu0.b32.cont [6/16] 0.0, 128
    %540 = vxpose.xlu0.b32.cont [7/16] 0.0, 128
    %541 = vxpose.xlu0.b32.cont [8/16] 0.0, 128
    %542 = vxpose.xlu0.b32.cont [9/16] 0.0, 128
    %543 = vxpose.xlu0.b32.cont [10/16] 0.0, 128
    %544 = vxpose.xlu0.b32.cont [11/16] 0.0, 128
    %545 = vxpose.xlu0.b32.cont [12/16] 0.0, 128
    %546 = vxpose.xlu0.b32.cont [13/16] 0.0, 128
    %547 = vxpose.xlu0.b32.cont [14/16] 0.0, 128
    %548 = vxpose.xlu0.b32.cont [15/16] 0.0, 128
    %549 = vxpose.xlu0.b32.end [16/16] 0.0, 128
    %v550 = vpop.trf.xlu0
    %v551 = vpop.trf.xlu0
    %v552 = vpop.trf.xlu0
    %v553 = vpop.trf.xlu0
    %v554 = vpop.trf.xlu0
    %v555 = vpop.trf.xlu0
    %v556 = vpop.trf.xlu0
    %v557 = vpop.trf.xlu0
    %v558 = vpop.trf.xlu0
    %v559 = vpop.trf.xlu0
    %v560 = vpop.trf.xlu0
    %v561 = vpop.trf.xlu0
    %v562 = vpop.trf.xlu0
    %v563 = vpop.trf.xlu0
    %v564 = vpop.trf.xlu0
    %v565 = vpop.trf.xlu0
    %v567 = vsel %vm202, %v550, 0
    %v570 = vsel %vm202, %v551, 0
    %v573 = vsel %vm202, %v552, 0
    %v576 = vsel %vm202, %v553, 0
    %v579 = vsel %vm202, %v554, 0
    %v582 = vsel %vm202, %v555, 0
    %v585 = vsel %vm202, %v556, 0
    %v588 = vsel %vm202, %v557, 0
    %v591 = vsel %vm202, %v558, 0
    %v594 = vsel %vm202, %v559, 0
    %v597 = vsel %vm202, %v560, 0
    %v600 = vsel %vm202, %v561, 0
    %v603 = vsel %vm202, %v562, 0
    %v606 = vsel %vm202, %v563, 0
    %v609 = vsel %vm202, %v564, 0
    %v612 = vsel %vm202, %v565, 0
    %614 = vmatprep.subr.mxu0 0.0
    %615 = vmatpush1.msra.mxu0 %v533
    %616 = vmatprep.subr.mxu0 0.0
    %617 = vmatpush1.msra.mxu0 0.0
    %618 = vmatprep.subr.mxu0 0.0
    %619 = vmatpush1.msra.mxu0 0.0
    %620 = vmatprep.subr.mxu0 0.0
    %621 = vmatpush1.msra.mxu0 0.0
    %622 = vmatprep.subr.mxu0 0.0
    %623 = vmatpush1.msra.mxu0 0.0
    %624 = vmatprep.subr.mxu0 0.0
    %625 = vmatpush1.msra.mxu0 0.0
    %626 = vmatprep.subr.mxu0 0.0
    %627 = vmatpush1.msra.mxu0 0.0
    %628 = vmatprep.subr.mxu0 0.0
    %629 = vmatpush1.msra.mxu0 0.0
    %630 = vmatprep.subr.mxu0 0.0
    %631 = vmatpush1.msra.mxu0 0.0
    %632 = vmatprep.subr.mxu0 0.0
    %633 = vmatpush1.msra.mxu0 0.0
    %634 = vmatprep.subr.mxu0 0.0
    %635 = vmatpush1.msra.mxu0 0.0
    %636 = vmatprep.subr.mxu0 0.0
    %637 = vmatpush1.msra.mxu0 0.0
    %638 = vmatprep.subr.mxu0 0.0
    %639 = vmatpush1.msra.mxu0 0.0
    %640 = vmatprep.subr.mxu0 0.0
    %641 = vmatpush1.msra.mxu0 0.0
    %642 = vmatprep.subr.mxu0 0.0
    %643 = vmatpush1.msra.mxu0 0.0
    %644 = vmatprep.subr.mxu0 0.0
    %645 = vmatpush1.msra.mxu0 0.0
    %646 = vmatprep.subr.mxu0 0.0
    %647 = vmatpush1.msra.mxu0 0.0
    %648 = vmatprep.subr.mxu0 0.0
    %649 = vmatpush1.msra.mxu0 0.0
    %650 = vmatprep.subr.mxu0 0.0
    %651 = vmatpush1.msra.mxu0 0.0
    %652 = vmatprep.subr.mxu0 0.0
    %653 = vmatpush1.msra.mxu0 0.0
    %654 = vmatprep.subr.mxu0 0.0
    %655 = vmatpush1.msra.mxu0 0.0
    %656 = vmatprep.subr.mxu0 0.0
    %657 = vmatpush1.msra.mxu0 0.0
    %658 = vmatprep.subr.mxu0 0.0
    %659 = vmatpush1.msra.mxu0 0.0
    %660 = vmatprep.subr.mxu0 0.0
    %661 = vmatpush1.msra.mxu0 0.0
    %662 = vmatprep.subr.mxu0 0.0
    %663 = vmatpush1.msra.mxu0 0.0
    %664 = vmatprep.subr.mxu0 0.0
    %665 = vmatpush1.msra.mxu0 0.0
    %666 = vmatprep.subr.mxu0 0.0
    %667 = vmatpush1.msra.mxu0 0.0
    %668 = vmatprep.subr.mxu0 0.0
    %669 = vmatpush1.msra.mxu0 0.0
    %670 = vmatprep.subr.mxu0 0.0
    %671 = vmatpush1.msra.mxu0 0.0
    %672 = vmatprep.subr.mxu0 0.0
    %673 = vmatpush1.msra.mxu0 0.0
    %674 = vmatprep.subr.mxu0 0.0
    %675 = vmatpush1.msra.mxu0 0.0
    %676 = vmatprep.subr.mxu0 0.0
    %677 = vmatpush1.msra.mxu0 0.0
    %678 = vmatprep.mubr.f32.mxu0 0.0
    %679 = vmatmul.mubr.f32.gmra.mrb[0].mxu0 %v567
    %v680 = vpop.f32.mrb[0].mxu0
    %v681 = vadd.f32 0.0, %v680
    %v682 = vpop.f32.mrb[0].mxu0
    %683 = vmatprep.mubr.f32.mxu0 0.0
    %684 = vmatmul.mubr.f32.gmra.mrb[0].mxu0 %v570
    %v685 = vpop.f32.mrb[0].mxu0
    %v686 = vadd.f32 0.0, %v685
    %v687 = vpop.f32.mrb[0].mxu0
    %688 = vmatprep.mubr.f32.mxu0 0.0
    %689 = vmatmul.mubr.f32.gmra.mrb[0].mxu0 %v573
    %v690 = vpop.f32.mrb[0].mxu0
    %v691 = vadd.f32 0.0, %v690
    %v692 = vpop.f32.mrb[0].mxu0
    %693 = vmatprep.mubr.f32.mxu0 0.0
    %694 = vmatmul.mubr.f32.gmra.mrb[0].mxu0 %v576
    %v695 = vpop.f32.mrb[0].mxu0
    %v696 = vadd.f32 0.0, %v695
    %v697 = vpop.f32.mrb[0].mxu0
    %698 = vmatprep.mubr.f32.mxu0 0.0
    %699 = vmatmul.mubr.f32.gmra.mrb[0].mxu0 %v579
    %v700 = vpop.f32.mrb[0].mxu0
    %v701 = vadd.f32 0.0, %v700
    %v702 = vpop.f32.mrb[0].mxu0
    %703 = vmatprep.mubr.f32.mxu0 0.0
    %704 = vmatmul.mubr.f32.gmra.mrb[0].mxu0 %v582
    %v705 = vpop.f32.mrb[0].mxu0
    %v706 = vadd.f32 0.0, %v705
    %v707 = vpop.f32.mrb[0].mxu0
    %708 = vmatprep.mubr.f32.mxu0 0.0
    %709 = vmatmul.mubr.f32.gmra.mrb[0].mxu0 %v585
    %v710 = vpop.f32.mrb[0].mxu0
    %v711 = vadd.f32 0.0, %v710
    %v712 = vpop.f32.mrb[0].mxu0
    %713 = vmatprep.mubr.f32.mxu0 0.0
    %714 = vmatmul.mubr.f32.gmra.mrb[0].mxu0 %v588
    %v715 = vpop.f32.mrb[0].mxu0
    %v716 = vadd.f32 0.0, %v715
    %v717 = vpop.f32.mrb[0].mxu0
    %718 = vmatprep.mubr.f32.mxu0 0.0
    %719 = vmatmul.mubr.f32.gmra.mrb[0].mxu0 %v591
    %v720 = vpop.f32.mrb[0].mxu0
    %v721 = vadd.f32 0.0, %v720
    %v722 = vpop.f32.mrb[0].mxu0
    %723 = vmatprep.mubr.f32.mxu0 0.0
    %724 = vmatmul.mubr.f32.gmra.mrb[0].mxu0 %v594
    %v725 = vpop.f32.mrb[0].mxu0
    %v726 = vadd.f32 0.0, %v725
    %v727 = vpop.f32.mrb[0].mxu0
    %728 = vmatprep.mubr.f32.mxu0 0.0
    %729 = vmatmul.mubr.f32.gmra.mrb[0].mxu0 %v597
    %v730 = vpop.f32.mrb[0].mxu0
    %v731 = vadd.f32 0.0, %v730
    %v732 = vpop.f32.mrb[0].mxu0
    %733 = vmatprep.mubr.f32.mxu0 0.0
    %734 = vmatmul.mubr.f32.gmra.mrb[0].mxu0 %v600
    %v735 = vpop.f32.mrb[0].mxu0
    %v736 = vadd.f32 0.0, %v735
    %v737 = vpop.f32.mrb[0].mxu0
    %738 = vmatprep.mubr.f32.mxu0 0.0
    %739 = vmatmul.mubr.f32.gmra.mrb[0].mxu0 %v603
    %v740 = vpop.f32.mrb[0].mxu0
    %v741 = vadd.f32 0.0, %v740
    %v742 = vpop.f32.mrb[0].mxu0
    %743 = vmatprep.mubr.f32.mxu0 0.0
    %744 = vmatmul.mubr.f32.gmra.mrb[0].mxu0 %v606
    %v745 = vpop.f32.mrb[0].mxu0
    %v746 = vadd.f32 0.0, %v745
    %v747 = vpop.f32.mrb[0].mxu0
    %748 = vmatprep.mubr.f32.mxu0 0.0
    %749 = vmatmul.mubr.f32.gmra.mrb[0].mxu0 %v609
    %v750 = vpop.f32.mrb[0].mxu0
    %v751 = vadd.f32 0.0, %v750
    %v752 = vpop.f32.mrb[0].mxu0
    %753 = vmatprep.mubr.f32.mxu0 0.0
    %754 = vmatmul.mubr.f32.gmra.mrb[0].mxu0 %v612
    %v755 = vpop.f32.mrb[0].mxu0
    %v756 = vadd.f32 0.0, %v755
    %v757 = vpop.f32.mrb[0].mxu0
    %758 = vdwg.mxu0
    %v759 = vrot.slane %v533, 4
    %v760 = vadd.f32 %v533, %v759
    %v761 = vrot.slane %v760, 2
    %v762 = vadd.f32 %v760, %v761
    %v763 = vrot.slane %v762, 1
    %v764 = vadd.f32 %v762, %v763
    %v765 = vmul.f32 %v402, %v681
    %v766 = vmul.f32 %v402, %v686
    %v767 = vmul.f32 %v402, %v691
    %v768 = vmul.f32 %v402, %v696
    %v769 = vmul.f32 %v402, %v701
    %v770 = vmul.f32 %v402, %v706
    %v771 = vmul.f32 %v402, %v711
    %v772 = vmul.f32 %v402, %v716
    %v773 = vmul.f32 %v402, %v721
    %v774 = vmul.f32 %v402, %v726
    %v775 = vmul.f32 %v402, %v731
    %v776 = vmul.f32 %v402, %v736
    %v777 = vmul.f32 %v402, %v741
    %v778 = vmul.f32 %v402, %v746
    %v779 = vmul.f32 %v402, %v751
    %v780 = vmul.f32 %v402, %v756
    %v781 = vsub.f32 %v419, %v765
    %v782 = vsub.f32 %v420, %v766
    %v783 = vsub.f32 %v421, %v767
    %v784 = vsub.f32 %v422, %v768
    %v785 = vsub.f32 %v423, %v769
    %v786 = vsub.f32 %v424, %v770
    %v787 = vsub.f32 %v425, %v771
    %v788 = vsub.f32 %v426, %v772
    %v789 = vsub.f32 %v427, %v773
    %v790 = vsub.f32 %v428, %v774
    %v791 = vsub.f32 %v429, %v775
    %v792 = vsub.f32 %v430, %v776
    %v793 = vsub.f32 %v431, %v777
    %v794 = vsub.f32 %v432, %v778
    %v795 = vsub.f32 %v433, %v779
    %v796 = vsub.f32 %v434, %v780
    %v797 = vmul.f32 %v402, %v764
    %v798 = vsub.f32 %v436, %v797
    %s799 = scalar_lea.vmem %s1, 16
    %v800 = vld [vmem:[%s799] sm:$0xff]
    %s801 = scalar_lea.vmem %s2, 16
    %v802 = vld [vmem:[%s801] sm:$0xff]
    %803 = vset.pattern.permute.xlu0 0
    %804 = vperm.xlu0 %803, %v802
    %v805 = vpop.permute.xlu0 %804
    %vm806 = vcmp.eq.s32.totalorder %v57, %v805
    %v807 = vsel %vm806, 1, 0
    %v808 = vcvt.s32.f32 %v807
    %v810 = vlaneseq
    %v811 = vshrl.u32 %v810, 7
    %v812 = vsub.s32 0, %v811
    %v813 = vrot.slane %v798, %v812
    %815 = vmatprep.subr.mxu0 0.0
    %816 = vmatpush1.msra.mxu0 %v781
    %817 = vmatprep.subr.mxu0 0.0
    %818 = vmatpush1.msra.mxu0 %v782
    %819 = vmatprep.subr.mxu0 0.0
    %820 = vmatpush1.msra.mxu0 %v783
    %821 = vmatprep.subr.mxu0 0.0
    %822 = vmatpush1.msra.mxu0 %v784
    %823 = vmatprep.subr.mxu0 0.0
    %824 = vmatpush1.msra.mxu0 %v785
    %825 = vmatprep.subr.mxu0 0.0
    %826 = vmatpush1.msra.mxu0 %v786
    %827 = vmatprep.subr.mxu0 0.0
    %828 = vmatpush1.msra.mxu0 %v787
    %829 = vmatprep.subr.mxu0 0.0
    %830 = vmatpush1.msra.mxu0 %v788
    %831 = vmatprep.subr.mxu0 0.0
    %832 = vmatpush1.msra.mxu0 %v789
    %833 = vmatprep.subr.mxu0 0.0
    %834 = vmatpush1.msra.mxu0 %v790
    %835 = vmatprep.subr.mxu0 0.0
    %836 = vmatpush1.msra.mxu0 %v791
    %837 = vmatprep.subr.mxu0 0.0
    %838 = vmatpush1.msra.mxu0 %v792
    %839 = vmatprep.subr.mxu0 0.0
    %840 = vmatpush1.msra.mxu0 %v793
    %841 = vmatprep.subr.mxu0 0.0
    %842 = vmatpush1.msra.mxu0 %v794
    %843 = vmatprep.subr.mxu0 0.0
    %844 = vmatpush1.msra.mxu0 %v795
    %845 = vmatprep.subr.mxu0 0.0
    %846 = vmatpush1.msra.mxu0 %v796
    %847 = vmatprep.subr.mxu0 0.0
    %848 = vmatpush1.msra.mxu0 0.0
    %849 = vmatprep.subr.mxu0 0.0
    %850 = vmatpush1.msra.mxu0 0.0
    %851 = vmatprep.subr.mxu0 0.0
    %852 = vmatpush1.msra.mxu0 0.0
    %853 = vmatprep.subr.mxu0 0.0
    %854 = vmatpush1.msra.mxu0 0.0
    %855 = vmatprep.subr.mxu0 0.0
    %856 = vmatpush1.msra.mxu0 0.0
    %857 = vmatprep.subr.mxu0 0.0
    %858 = vmatpush1.msra.mxu0 0.0
    %859 = vmatprep.subr.mxu0 0.0
    %860 = vmatpush1.msra.mxu0 0.0
    %861 = vmatprep.subr.mxu0 0.0
    %862 = vmatpush1.msra.mxu0 0.0
    %863 = vmatprep.subr.mxu0 0.0
    %864 = vmatpush1.msra.mxu0 0.0
    %865 = vmatprep.subr.mxu0 0.0
    %866 = vmatpush1.msra.mxu0 0.0
    %867 = vmatprep.subr.mxu0 0.0
    %868 = vmatpush1.msra.mxu0 0.0
    %869 = vmatprep.subr.mxu0 0.0
    %870 = vmatpush1.msra.mxu0 0.0
    %871 = vmatprep.subr.mxu0 0.0
    %872 = vmatpush1.msra.mxu0 0.0
    %873 = vmatprep.subr.mxu0 0.0
    %874 = vmatpush1.msra.mxu0 0.0
    %875 = vmatprep.subr.mxu0 0.0
    %876 = vmatpush1.msra.mxu0 0.0
    %877 = vmatprep.subr.mxu0 0.0
    %878 = vmatpush1.msra.mxu0 0.0
    %879 = vmatprep.mubr.f32.mxu0 0.0
    %880 = vmatmul.mubr.f32.gmra.mrb[0].mxu0 %v800
    %v881 = vpop.f32.mrb[0].mxu0
    %v882 = vadd.f32 %v813, %v881
    %v883 = vpop.f32.mrb[0].mxu0
    %884 = vdwg.mxu0
    %885 = vmax.xlane.f32.xlu0 %v882
    %v886 = vpop.xlane.xlu0 %885
    %v887 = vsub.f32 %v882, %v886
    %v888 = vmul.f32 %v887, 1.442695
    %v889 = vpow.pop %v888
    %890 = vadd.xlane.f32.xlu0 %v889
    %v891 = vpop.xlane.xlu0 %890
    %v892 = vrcp.pop %v891
    %v893 = vmul.f32 %v889, %v892
    %v894 = vsub.f32 %v893, %v808
    %v895 = vmul.f32 %v894, 0.125
    %896 = vxpose.xlu0.b32.start [1/16] %v800, 128
    %897 = vxpose.xlu0.b32.cont [2/16] 0.0, 128
    %898 = vxpose.xlu0.b32.cont [3/16] 0.0, 128
    %899 = vxpose.xlu0.b32.cont [4/16] 0.0, 128
    %900 = vxpose.xlu0.b32.cont [5/16] 0.0, 128
    %901 = vxpose.xlu0.b32.cont [6/16] 0.0, 128
    %902 = vxpose.xlu0.b32.cont [7/16] 0.0, 128
    %903 = vxpose.xlu0.b32.cont [8/16] 0.0, 128
    %904 = vxpose.xlu0.b32.cont [9/16] 0.0, 128
    %905 = vxpose.xlu0.b32.cont [10/16] 0.0, 128
    %906 = vxpose.xlu0.b32.cont [11/16] 0.0, 128
    %907 = vxpose.xlu0.b32.cont [12/16] 0.0, 128
    %908 = vxpose.xlu0.b32.cont [13/16] 0.0, 128
    %909 = vxpose.xlu0.b32.cont [14/16] 0.0, 128
    %910 = vxpose.xlu0.b32.cont [15/16] 0.0, 128
    %911 = vxpose.xlu0.b32.end [16/16] 0.0, 128
    %v912 = vpop.trf.xlu0
    %v913 = vpop.trf.xlu0
    %v914 = vpop.trf.xlu0
    %v915 = vpop.trf.xlu0
    %v916 = vpop.trf.xlu0
    %v917 = vpop.trf.xlu0
    %v918 = vpop.trf.xlu0
    %v919 = vpop.trf.xlu0
    %v920 = vpop.trf.xlu0
    %v921 = vpop.trf.xlu0
    %v922 = vpop.trf.xlu0
    %v923 = vpop.trf.xlu0
    %v924 = vpop.trf.xlu0
    %v925 = vpop.trf.xlu0
    %v926 = vpop.trf.xlu0
    %v927 = vpop.trf.xlu0
    %v929 = vsel %vm202, %v912, 0
    %v932 = vsel %vm202, %v913, 0
    %v935 = vsel %vm202, %v914, 0
    %v938 = vsel %vm202, %v915, 0
    %v941 = vsel %vm202, %v916, 0
    %v944 = vsel %vm202, %v917, 0
    %v947 = vsel %vm202, %v918, 0
    %v950 = vsel %vm202, %v919, 0
    %v953 = vsel %vm202, %v920, 0
    %v956 = vsel %vm202, %v921, 0
    %v959 = vsel %vm202, %v922, 0
    %v962 = vsel %vm202, %v923, 0
    %v965 = vsel %vm202, %v924, 0
    %v968 = vsel %vm202, %v925, 0
    %v971 = vsel %vm202, %v926, 0
    %v974 = vsel %vm202, %v927, 0
    %976 = vmatprep.subr.mxu0 0.0
    %977 = vmatpush1.msra.mxu0 %v895
    %978 = vmatprep.subr.mxu0 0.0
    %979 = vmatpush1.msra.mxu0 0.0
    %980 = vmatprep.subr.mxu0 0.0
    %981 = vmatpush1.msra.mxu0 0.0
    %982 = vmatprep.subr.mxu0 0.0
    %983 = vmatpush1.msra.mxu0 0.0
    %984 = vmatprep.subr.mxu0 0.0
    %985 = vmatpush1.msra.mxu0 0.0
    %986 = vmatprep.subr.mxu0 0.0
    %987 = vmatpush1.msra.mxu0 0.0
    %988 = vmatprep.subr.mxu0 0.0
    %989 = vmatpush1.msra.mxu0 0.0
    %990 = vmatprep.subr.mxu0 0.0
    %991 = vmatpush1.msra.mxu0 0.0
    %992 = vmatprep.subr.mxu0 0.0
    %993 = vmatpush1.msra.mxu0 0.0
    %994 = vmatprep.subr.mxu0 0.0
    %995 = vmatpush1.msra.mxu0 0.0
    %996 = vmatprep.subr.mxu0 0.0
    %997 = vmatpush1.msra.mxu0 0.0
    %998 = vmatprep.subr.mxu0 0.0
    %999 = vmatpush1.msra.mxu0 0.0
    %1000 = vmatprep.subr.mxu0 0.0
    %1001 = vmatpush1.msra.mxu0 0.0
    %1002 = vmatprep.subr.mxu0 0.0
    %1003 = vmatpush1.msra.mxu0 0.0
    %1004 = vmatprep.subr.mxu0 0.0
    %1005 = vmatpush1.msra.mxu0 0.0
    %1006 = vmatprep.subr.mxu0 0.0
    %1007 = vmatpush1.msra.mxu0 0.0
    %1008 = vmatprep.subr.mxu0 0.0
    %1009 = vmatpush1.msra.mxu0 0.0
    %1010 = vmatprep.subr.mxu0 0.0
    %1011 = vmatpush1.msra.mxu0 0.0
    %1012 = vmatprep.subr.mxu0 0.0
    %1013 = vmatpush1.msra.mxu0 0.0
    %1014 = vmatprep.subr.mxu0 0.0
    %1015 = vmatpush1.msra.mxu0 0.0
    %1016 = vmatprep.subr.mxu0 0.0
    %1017 = vmatpush1.msra.mxu0 0.0
    %1018 = vmatprep.subr.mxu0 0.0
    %1019 = vmatpush1.msra.mxu0 0.0
    %1020 = vmatprep.subr.mxu0 0.0
    %1021 = vmatpush1.msra.mxu0 0.0
    %1022 = vmatprep.subr.mxu0 0.0
    %1023 = vmatpush1.msra.mxu0 0.0
    %1024 = vmatprep.subr.mxu0 0.0
    %1025 = vmatpush1.msra.mxu0 0.0
    %1026 = vmatprep.subr.mxu0 0.0
    %1027 = vmatpush1.msra.mxu0 0.0
    %1028 = vmatprep.subr.mxu0 0.0
    %1029 = vmatpush1.msra.mxu0 0.0
    %1030 = vmatprep.subr.mxu0 0.0
    %1031 = vmatpush1.msra.mxu0 0.0
    %1032 = vmatprep.subr.mxu0 0.0
    %1033 = vmatpush1.msra.mxu0 0.0
    %1034 = vmatprep.subr.mxu0 0.0
    %1035 = vmatpush1.msra.mxu0 0.0
    %1036 = vmatprep.subr.mxu0 0.0
    %1037 = vmatpush1.msra.mxu0 0.0
    %1038 = vmatprep.subr.mxu0 0.0
    %1039 = vmatpush1.msra.mxu0 0.0
    %1040 = vmatprep.mubr.f32.mxu0 0.0
    %1041 = vmatmul.mubr.f32.gmra.mrb[0].mxu0 %v929
    %v1042 = vpop.f32.mrb[0].mxu0
    %v1043 = vadd.f32 0.0, %v1042
    %v1044 = vpop.f32.mrb[0].mxu0
    %1045 = vmatprep.mubr.f32.mxu0 0.0
    %1046 = vmatmul.mubr.f32.gmra.mrb[0].mxu0 %v932
    %v1047 = vpop.f32.mrb[0].mxu0
    %v1048 = vadd.f32 0.0, %v1047
    %v1049 = vpop.f32.mrb[0].mxu0
    %1050 = vmatprep.mubr.f32.mxu0 0.0
    %1051 = vmatmul.mubr.f32.gmra.mrb[0].mxu0 %v935
    %v1052 = vpop.f32.mrb[0].mxu0
    %v1053 = vadd.f32 0.0, %v1052
    %v1054 = vpop.f32.mrb[0].mxu0
    %1055 = vmatprep.mubr.f32.mxu0 0.0
    %1056 = vmatmul.mubr.f32.gmra.mrb[0].mxu0 %v938
    %v1057 = vpop.f32.mrb[0].mxu0
    %v1058 = vadd.f32 0.0, %v1057
    %v1059 = vpop.f32.mrb[0].mxu0
    %1060 = vmatprep.mubr.f32.mxu0 0.0
    %1061 = vmatmul.mubr.f32.gmra.mrb[0].mxu0 %v941
    %v1062 = vpop.f32.mrb[0].mxu0
    %v1063 = vadd.f32 0.0, %v1062
    %v1064 = vpop.f32.mrb[0].mxu0
    %1065 = vmatprep.mubr.f32.mxu0 0.0
    %1066 = vmatmul.mubr.f32.gmra.mrb[0].mxu0 %v944
    %v1067 = vpop.f32.mrb[0].mxu0
    %v1068 = vadd.f32 0.0, %v1067
    %v1069 = vpop.f32.mrb[0].mxu0
    %1070 = vmatprep.mubr.f32.mxu0 0.0
    %1071 = vmatmul.mubr.f32.gmra.mrb[0].mxu0 %v947
    %v1072 = vpop.f32.mrb[0].mxu0
    %v1073 = vadd.f32 0.0, %v1072
    %v1074 = vpop.f32.mrb[0].mxu0
    %1075 = vmatprep.mubr.f32.mxu0 0.0
    %1076 = vmatmul.mubr.f32.gmra.mrb[0].mxu0 %v950
    %v1077 = vpop.f32.mrb[0].mxu0
    %v1078 = vadd.f32 0.0, %v1077
    %v1079 = vpop.f32.mrb[0].mxu0
    %1080 = vmatprep.mubr.f32.mxu0 0.0
    %1081 = vmatmul.mubr.f32.gmra.mrb[0].mxu0 %v953
    %v1082 = vpop.f32.mrb[0].mxu0
    %v1083 = vadd.f32 0.0, %v1082
    %v1084 = vpop.f32.mrb[0].mxu0
    %1085 = vmatprep.mubr.f32.mxu0 0.0
    %1086 = vmatmul.mubr.f32.gmra.mrb[0].mxu0 %v956
    %v1087 = vpop.f32.mrb[0].mxu0
    %v1088 = vadd.f32 0.0, %v1087
    %v1089 = vpop.f32.mrb[0].mxu0
    %1090 = vmatprep.mubr.f32.mxu0 0.0
    %1091 = vmatmul.mubr.f32.gmra.mrb[0].mxu0 %v959
    %v1092 = vpop.f32.mrb[0].mxu0
    %v1093 = vadd.f32 0.0, %v1092
    %v1094 = vpop.f32.mrb[0].mxu0
    %1095 = vmatprep.mubr.f32.mxu0 0.0
    %1096 = vmatmul.mubr.f32.gmra.mrb[0].mxu0 %v962
    %v1097 = vpop.f32.mrb[0].mxu0
    %v1098 = vadd.f32 0.0, %v1097
    %v1099 = vpop.f32.mrb[0].mxu0
    %1100 = vmatprep.mubr.f32.mxu0 0.0
    %1101 = vmatmul.mubr.f32.gmra.mrb[0].mxu0 %v965
    %v1102 = vpop.f32.mrb[0].mxu0
    %v1103 = vadd.f32 0.0, %v1102
    %v1104 = vpop.f32.mrb[0].mxu0
    %1105 = vmatprep.mubr.f32.mxu0 0.0
    %1106 = vmatmul.mubr.f32.gmra.mrb[0].mxu0 %v968
    %v1107 = vpop.f32.mrb[0].mxu0
    %v1108 = vadd.f32 0.0, %v1107
    %v1109 = vpop.f32.mrb[0].mxu0
    %1110 = vmatprep.mubr.f32.mxu0 0.0
    %1111 = vmatmul.mubr.f32.gmra.mrb[0].mxu0 %v971
    %v1112 = vpop.f32.mrb[0].mxu0
    %v1113 = vadd.f32 0.0, %v1112
    %v1114 = vpop.f32.mrb[0].mxu0
    %1115 = vmatprep.mubr.f32.mxu0 0.0
    %1116 = vmatmul.mubr.f32.gmra.mrb[0].mxu0 %v974
    %v1117 = vpop.f32.mrb[0].mxu0
    %v1118 = vadd.f32 0.0, %v1117
    %v1119 = vpop.f32.mrb[0].mxu0
    %1120 = vdwg.mxu0
    %v1121 = vrot.slane %v895, 4
    %v1122 = vadd.f32 %v895, %v1121
    %v1123 = vrot.slane %v1122, 2
    %v1124 = vadd.f32 %v1122, %v1123
    %v1125 = vrot.slane %v1124, 1
    %v1126 = vadd.f32 %v1124, %v1125
    %v1127 = vmul.f32 %v402, %v1043
    %v1128 = vmul.f32 %v402, %v1048
    %v1129 = vmul.f32 %v402, %v1053
    %v1130 = vmul.f32 %v402, %v1058
    %v1131 = vmul.f32 %v402, %v1063
    %v1132 = vmul.f32 %v402, %v1068
    %v1133 = vmul.f32 %v402, %v1073
    %v1134 = vmul.f32 %v402, %v1078
    %v1135 = vmul.f32 %v402, %v1083
    %v1136 = vmul.f32 %v402, %v1088
    %v1137 = vmul.f32 %v402, %v1093
    %v1138 = vmul.f32 %v402, %v1098
    %v1139 = vmul.f32 %v402, %v1103
    %v1140 = vmul.f32 %v402, %v1108
    %v1141 = vmul.f32 %v402, %v1113
    %v1142 = vmul.f32 %v402, %v1118
    %v1143 = vsub.f32 %v781, %v1127
    %v1144 = vsub.f32 %v782, %v1128
    %v1145 = vsub.f32 %v783, %v1129
    %v1146 = vsub.f32 %v784, %v1130
    %v1147 = vsub.f32 %v785, %v1131
    %v1148 = vsub.f32 %v786, %v1132
    %v1149 = vsub.f32 %v787, %v1133
    %v1150 = vsub.f32 %v788, %v1134
    %v1151 = vsub.f32 %v789, %v1135
    %v1152 = vsub.f32 %v790, %v1136
    %v1153 = vsub.f32 %v791, %v1137
    %v1154 = vsub.f32 %v792, %v1138
    %v1155 = vsub.f32 %v793, %v1139
    %v1156 = vsub.f32 %v794, %v1140
    %v1157 = vsub.f32 %v795, %v1141
    %v1158 = vsub.f32 %v796, %v1142
    %v1159 = vmul.f32 %v402, %v1126
    %v1160 = vsub.f32 %v798, %v1159
    %1161 = vst [vmem:[#allocation9] sm:$0xff] %v1143
    %1162 = vst [vmem:[#allocation9 + $0x8] sm:$0xff] %v1144
    %1163 = vst [vmem:[#allocation9 + $0x10] sm:$0xff] %v1145
    %1164 = vst [vmem:[#allocation9 + $0x18] sm:$0xff] %v1146
    %1165 = vst [vmem:[#allocation9 + $0x20] sm:$0xff] %v1147
    %1166 = vst [vmem:[#allocation9 + $0x28] sm:$0xff] %v1148
    %1167 = vst [vmem:[#allocation9 + $0x30] sm:$0xff] %v1149
    %1168 = vst [vmem:[#allocation9 + $0x38] sm:$0xff] %v1150
    %1169 = vst [vmem:[#allocation9 + $0x40] sm:$0xff] %v1151
    %1170 = vst [vmem:[#allocation9 + $0x48] sm:$0xff] %v1152
    %1171 = vst [vmem:[#allocation9 + $0x50] sm:$0xff] %v1153
    %1172 = vst [vmem:[#allocation9 + $0x58] sm:$0xff] %v1154
    %1173 = vst [vmem:[#allocation9 + $0x60] sm:$0xff] %v1155
    %1174 = vst [vmem:[#allocation9 + $0x68] sm:$0xff] %v1156
    %1175 = vst [vmem:[#allocation9 + $0x70] sm:$0xff] %v1157
    %1176 = vst [vmem:[#allocation9 + $0x78] sm:$0xff] %v1158
    %1177 = vst [vmem:[#allocation10] sm:$0x1] %v1160
    %v1178 = vlog2.pop %v891
    %v1179 = vmul.f32 %v1178, 0.6931472
    %v1180 = vsub.f32 %v887, %v1179
    %v1181 = vmul.f32 %v808, %v1180
    %1182 = vadd.xlane.f32.xlu0 %v1181
    %v1183 = vpop.xlane.xlu0 %1182
    %v1184 = vrot.slane %v1183, 4
    %v1185 = vadd.f32 %v1183, %v1184
    %v1186 = vrot.slane %v1185, 2
    %v1187 = vadd.f32 %v1185, %v1186
    %v1188 = vrot.slane %v1187, 1
    %v1189 = vadd.f32 %v1187, %v1188
    %s1190 = vtos %v1189
    %s1191 = ssub.f32 0.0, %s1190
    %s1192 = smul.f32 %s1191, 0.125
    %s1193 = scalar_lea.smem [#allocation12], 0
    %1194 = sst [smem:[%s1193]] %s1192
    %vm1195 = vcmp.ge.f32.partialorder %v882, %v886
    %v1196 = vsel %vm1195, %v57, 128
    %v1197 = vand.u32 %v1196, 65535
    %v1198 = vshra.s32 %v1196, 16
    %v1199 = vcvt.s32.f32 %v1197
    %v1200 = vcvt.s32.f32 %v1198
    %1201 = vmin.xlane.f32.xlu0 %v1200
    %v1202 = vpop.xlane.xlu0 %1201
    %vm1203 = vcmp.eq.f32.partialorder %v1200, %v1202
    %v1204 = vsel %vm1203, %v1199, inf
    %1205 = vmin.xlane.f32.xlu0 %v1204
    %v1206 = vpop.xlane.xlu0 %1205
    %v1207 = vcvt.f32.s32 %v1206
    %v1208 = vcvt.f32.s32 %v1202
    %v1209 = vshll.u32 %v1208, 16
    %v1210 = vadd.s32 %v1209, %v1207
    %vm1211 = vcmp.eq.s32.totalorder %v1210, %v802
    %v1212 = vsel %vm1211, 1, 0
    %v1213 = vcvt.s32.f32 %v1212
    %vm1214 = vcmask 7168
    %v1215 = vsel %vm1214, %v1213, 0.0
    %1216 = vadd.xlane.f32.xlu0 %v1215
    %v1217 = vpop.xlane.xlu0 %1216
    %v1218 = vrot.slane %v1217, 4
    %v1219 = vadd.f32 %v1217, %v1218
    %v1220 = vrot.slane %v1219, 2
    %v1221 = vadd.f32 %v1219, %v1220
    %v1222 = vrot.slane %v1221, 1
    %v1223 = vadd.f32 %v1221, %v1222
    %s1224 = vtos %v1223
    %s1225 = smul.f32 %s1224, 0.125
    %s1226 = scalar_lea.smem [#allocation13], 0
    %1227 = sst [smem:[%s1226]] %s1225
    // Predicated region
    $region30: #{tpu_custom_call.1} parent=1 // pred_check
      _
    $region31: #{tpu_custom_call.1} parent=1 // pred_check_branch
      %1229 = sbr.rel (0) target = $region33
    $region32: #{tpu_custom_call.1} parent=1 // pred_region
      %s1231 = ssub.s32 2048, 2048
      %1232 = vsyncadd [#allocation5], %s1231
      %s1233 = sshll.u32 [#allocation9], 4
      %s1234 = int_to_ptr.vmem [resolvable:$true] %s1233
      %1239 = dma.vmem_to_hbm [thread:$0]  %s1234, 2048, %s5, [#allocation5], 128, 128, 8
    $region33: #{tpu_custom_call.1} parent=1 // pred_fallthru
      _
    // Predicated region
    $region34: #{tpu_custom_call.1} parent=1 // pred_check
      _
    $region35: #{tpu_custom_call.1} parent=1 // pred_check_branch
      %1241 = sbr.rel (0) target = $region37
    $region36: #{tpu_custom_call.1} parent=1 // pred_region
      %s1243 = ssub.s32 16, 16
      %1244 = vsyncadd [#allocation11], %s1243
      %s1246 = sshll.u32 [#allocation10], 4
      %s1247 = int_to_ptr.vmem [resolvable:$true] %s1246
      %1249 = dma.vmem_to_hbm [thread:$0]  %s1247, 16, %s6, [#allocation11]
    $region37: #{tpu_custom_call.1} parent=1 // pred_fallthru
      _
    // Predicated region
    $region38: #{tpu_custom_call.1} parent=1 // pred_check
      _
    $region39: #{tpu_custom_call.1} parent=1 // pred_check_branch
      %1251 = sbr.rel (0) target = $region41
    $region40: #{tpu_custom_call.1} parent=1 // pred_region
      %s1253 = ssub.s32 16, 16
      %1254 = vsyncadd [#allocation6], %s1253
      %1257 = dma.smem_to_hbm [#allocation12], 16, %s7, [#allocation6]
    $region41: #{tpu_custom_call.1} parent=1 // pred_fallthru
      _
    // Predicated region
    $region42: #{tpu_custom_call.1} parent=1 // pred_check
      _
    $region43: #{tpu_custom_call.1} parent=1 // pred_check_branch
      %1259 = sbr.rel (0) target = $region45
    $region44: #{tpu_custom_call.1} parent=1 // pred_region
      %s1261 = ssub.s32 16, 16
      %1262 = vsyncadd [#allocation14], %s1261
      %1265 = dma.smem_to_hbm [#allocation13], 16, %s8, [#allocation14]
    $region45: #{tpu_custom_call.1} parent=1 // pred_fallthru
      _
    // Predicated region
    $region46: #{tpu_custom_call.1} parent=1 // pred_check
      _
    $region47: #{tpu_custom_call.1} parent=1 // pred_check_branch
      %1267 = sbr.rel (0) target = $region49
    $region48: #{tpu_custom_call.1} parent=1 // pred_region
      %1268 = dma.done [#allocation5], 2048
    $region49: #{tpu_custom_call.1} parent=1 // pred_fallthru
      _
    // Predicated region
    $region50: #{tpu_custom_call.1} parent=1 // pred_check
      _
    $region51: #{tpu_custom_call.1} parent=1 // pred_check_branch
      %1270 = sbr.rel (0) target = $region53
    $region52: #{tpu_custom_call.1} parent=1 // pred_region
      %1271 = dma.done [#allocation11], 16
    $region53: #{tpu_custom_call.1} parent=1 // pred_fallthru
      _
    // Predicated region
    $region54: #{tpu_custom_call.1} parent=1 // pred_check
      _
    $region55: #{tpu_custom_call.1} parent=1 // pred_check_branch
      %1273 = sbr.rel (0) target = $region57
    $region56: #{tpu_custom_call.1} parent=1 // pred_region
      %1274 = dma.done [#allocation6], 16
    $region57: #{tpu_custom_call.1} parent=1 // pred_fallthru
      _
    // Predicated region
    $region58: #{tpu_custom_call.1} parent=1 // pred_check
      _
    $region59: #{tpu_custom_call.1} parent=1 // pred_check_branch
      %1276 = sbr.rel (0) target = $region61
    $region60: #{tpu_custom_call.1} parent=1 // pred_region
      %1277 = dma.done [#allocation14], 16
    $region61: #{tpu_custom_call.1} parent=1 // pred_fallthru
      _
    %1278 = sfence
    %1279 = vsyncpa [#allocation4], 1
    %1280 = vsyncpa [#allocation8], 1
    %1281 = vsyncpa [#allocation5], 1
    %1282 = vsyncpa [#allocation11], 1
    %1283 = vsyncpa [#allocation6], 1
    %1284 = vsyncpa [#allocation14], 1

</llo_original>
